<compile_context>
chip_gen: v6e
topology: v6e:2x2x1
jax: 0.10.0
libtpu: 0.0.40
codegen_flags: <defaults>
</compile_context>

<pallas_src>
import functools

import jax
import jax.numpy as jnp
from jax.experimental import pallas as pl
from jax.experimental.pallas import tpu as pltpu

_F32, _BF16 = 4, 2


# ----------------------------------------------------------------------------
# Optional single-buffering of constant operands (pipeline_mode=pl.Buffered(1)).
# Feature-probed once with a tiny kernel so the script degrades gracefully on
# JAX versions that don't support it (VMEM accounting below always assumes the
# conservative double-buffered footprint, so either way we stay within budget).
# ----------------------------------------------------------------------------
_SINGLE_BUFFER_OK = None


def _probe_single_buffer():
    global _SINGLE_BUFFER_OK
    if _SINGLE_BUFFER_OK is not None:
        return _SINGLE_BUFFER_OK

    def _copy(x_ref, o_ref):
        o_ref[...] = x_ref[...]

    try:
        fn = pl.pallas_call(
            _copy,
            out_shape=jax.ShapeDtypeStruct((16, 128), jnp.float32),
            grid=(2,),
            in_specs=[pl.BlockSpec((8, 128), lambda i: (i, 0),
                                   pipeline_mode=pl.Buffered(1))],
            out_specs=pl.BlockSpec((8, 128), lambda i: (i, 0)),
        )
        jax.block_until_ready(fn(jnp.zeros((16, 128), jnp.float32)))
        _SINGLE_BUFFER_OK = True
    except Exception:
        _SINGLE_BUFFER_OK = False
    return _SINGLE_BUFFER_OK


def _const_spec(block_shape, index_map):
    """Spec for operands whose block index is constant along the inner grid
    axes: single-buffer them (double-buffering constants only burns VMEM)."""
    if _probe_single_buffer():
        return pl.BlockSpec(block_shape, index_map, pipeline_mode=pl.Buffered(1))
    return pl.BlockSpec(block_shape, index_map)


# ----------------------------------------------------------------------------
# Kernel A (default path): fused GroupNorm(num_groups=C) + q/k/v projection.
# The whole (HW, C) slab of one batch is resident in VMEM, so mean/variance is
# exact two-pass and x is read from HBM only once for the whole stage.
# ----------------------------------------------------------------------------
def _fused_norm_qkv_kernel(x_ref, gamma_ref, beta_ref, wqkv_ref, bqkv_ref,
                           q_ref, k_ref, v_ref, *, c, hw, eps):
    x = x_ref[...].astype(jnp.float32)                           # (HW, C)
    inv_hw = 1.0 / hw
    mean = jnp.sum(x, axis=0, keepdims=True) * inv_hw            # (1, C)
    xc = x - mean
    var = jnp.sum(xc * xc, axis=0, keepdims=True) * inv_hw
    rstd = jax.lax.rsqrt(var + eps)
    h = (xc * (gamma_ref[...] * rstd) + beta_ref[...]).astype(jnp.bfloat16)
    qkv = jnp.dot(h, wqkv_ref[...],
                  preferred_element_type=jnp.float32) + bqkv_ref[...]   # (HW, 3C)
    q_ref[...] = qkv[:, :c].astype(q_ref.dtype)      # 1/sqrt(C) folded into Wq/bq
    k_ref[...] = qkv[:, c:2 * c].astype(k_ref.dtype)
    v_ref[...] = qkv[:, 2 * c:].astype(v_ref.dtype)


# ----------------------------------------------------------------------------
# Fallback kernels (used when the per-batch slab does not fit VMEM):
#   B1) tiled one-pass per-(batch, channel) GroupNorm statistics,
#   B2) tiled normalize + fused q/k/v projection.
# ----------------------------------------------------------------------------
def _norm_stats_kernel(x_ref, gamma_ref, beta_ref, scale_ref, shift_ref,
                       sum_scr, sq_scr, *, hw, eps):
    t = pl.program_id(1)

    @pl.when(t == 0)
    def _():
        sum_scr[...] = jnp.zeros_like(sum_scr[...])
        sq_scr[...] = jnp.zeros_like(sq_scr[...])

    x = x_ref[...].astype(jnp.float32)                     # (Ts, C)
    sum_scr[...] += jnp.sum(x, axis=0, keepdims=True)      # (1, C)
    sq_scr[...] += jnp.sum(x * x, axis=0, keepdims=True)   # (1, C)

    @pl.when(t == pl.num_programs(1) - 1)
    def _():
        inv_hw = 1.0 / hw
        mean = sum_scr[...] * inv_hw
        # One-pass E[x^2]-mean^2 (clamped).  The default fused path uses exact
        # two-pass stats; this path only triggers for very large slabs.
        var = jnp.maximum(sq_scr[...] * inv_hw - mean * mean, 0.0)
        rstd = jax.lax.rsqrt(var + eps)
        a = gamma_ref[...] * rstd
        scale_ref[...] = a
        shift_ref[...] = beta_ref[...] - a * mean


def _qkv_kernel(x_ref, scale_ref, shift_ref, wqkv_ref, bqkv_ref,
                q_ref, k_ref, v_ref, *, c):
    x = x_ref[...].astype(jnp.float32)                           # (Tp, C)
    h = (x * scale_ref[...] + shift_ref[...]).astype(jnp.bfloat16)
    qkv = jnp.dot(h, wqkv_ref[...],
                  preferred_element_type=jnp.float32) + bqkv_ref[...]   # (Tp, 3C)
    q_ref[...] = qkv[:, :c].astype(q_ref.dtype)      # 1/sqrt(C) folded into Wq/bq
    k_ref[...] = qkv[:, c:2 * c].astype(k_ref.dtype)
    v_ref[...] = qkv[:, 2 * c:].astype(v_ref.dtype)


# ----------------------------------------------------------------------------
# Kernel C (default path): attention with per-batch resident K/V
# + proj_out + residual.  K/V index maps ignore the q-tile axis, so they are
# DMA'd once per batch; the softmax is computed over the full key range.
# ----------------------------------------------------------------------------
def _attn_resident_kv_kernel(x_ref, q_ref, k_ref, v_ref, wp_ref, bp_ref, o_ref):
    # scores (Tq, HW): contract the channel (lane) axis of q and k.
    s = jax.lax.dot_general(q_ref[...], k_ref[...],
                            (((1,), (1,)), ((), ())),
                            preferred_element_type=jnp.float32)
    m = jnp.max(s, axis=-1, keepdims=True)
    p = jnp.exp(s - m)
    l = jnp.sum(p, axis=-1, keepdims=True)
    acc = jnp.dot(p.astype(jnp.bfloat16), v_ref[...],
                  preferred_element_type=jnp.float32)            # (Tq, C)
    h_att = acc * pl.reciprocal(l, approx=False)
    proj = jnp.dot(h_att.astype(jnp.bfloat16), wp_ref[...],
                   preferred_element_type=jnp.float32) + bp_ref[...]
    o_ref[...] = (x_ref[...].astype(jnp.float32) + proj).astype(o_ref.dtype)


# ----------------------------------------------------------------------------
# Kernel D (fallback): flash attention (online softmax) + proj_out + residual,
# for shapes where the full per-batch K/V does not fit the VMEM budget.
# ----------------------------------------------------------------------------
def _flash_attn_kernel(x_ref, q_ref, k_ref, v_ref, wp_ref, bp_ref, o_ref,
                       m_scr, l_scr, acc_scr):
    kj = pl.program_id(2)

    @pl.when(kj == 0)
    def _():
        m_scr[...] = jnp.full_like(m_scr[...], -jnp.inf)
        l_scr[...] = jnp.zeros_like(l_scr[...])
        acc_scr[...] = jnp.zeros_like(acc_scr[...])

    s = jax.lax.dot_general(q_ref[...], k_ref[...],
                            (((1,), (1,)), ((), ())),
                            preferred_element_type=jnp.float32)   # (Tq, Tk)

    m_prev = m_scr[...]                                           # (Tq, 1)
    m_new = jnp.maximum(m_prev, jnp.max(s, axis=-1, keepdims=True))
    alpha = jnp.exp(m_prev - m_new)
    p = jnp.exp(s - m_new)
    l_scr[...] = alpha * l_scr[...] + jnp.sum(p, axis=-1, keepdims=True)
    acc_scr[...] = alpha * acc_scr[...] + jnp.dot(
        p.astype(jnp.bfloat16), v_ref[...], preferred_element_type=jnp.float32)
    m_scr[...] = m_new

    @pl.when(kj == pl.num_programs(2) - 1)
    def _():
        h_att = acc_scr[...] * pl.reciprocal(l_scr[...], approx=False)   # (Tq, C)
        proj = jnp.dot(h_att.astype(jnp.bfloat16), wp_ref[...],
                       preferred_element_type=jnp.float32) + bp_ref[...]
        o_ref[...] = (x_ref[...].astype(jnp.float32) + proj).astype(o_ref.dtype)


# ----------------------------------------------------------------------------
# VMEM-budget-driven tile planning.
# ----------------------------------------------------------------------------
def _tpu_vmem_capacity_bytes():
    try:
        return int(pltpu.get_tpu_info().vmem_capacity_bytes)
    except Exception:
        return 64 * 1024 * 1024          # conservative default (v7x per-core)


def _tile_candidates(n, cap):
    """Divisors of n that are <= cap and sublane-friendly (multiple of 8 or the
    full extent), largest first."""
    cap = max(1, min(int(cap), n))
    cands = [d for d in range(cap, 0, -1)
             if n % d == 0 and (d % 8 == 0 or d == n)]
    return cands or [n]


def _largest_tile(n, cap, budget, footprint_fn):
    cands = _tile_candidates(n, cap)
    for t in cands:
        if footprint_fn(t) <= budget:
            return t
    return cands[-1]


# Footprints are conservative: every operand is counted double-buffered (even
# though constants get Buffered(1)) plus rough f32/bf16 intermediate estimates.
def _fused_qkv_footprint(hw, c):
    return (2 * hw * c * _F32                       # x slab
            + 2 * c * 3 * c * _BF16                 # Wqkv^T
            + 2 * 3 * hw * c * _BF16                # q/k/v output blocks
            + hw * 3 * c * _F32                     # qkv f32 intermediate
            + hw * c * (_F32 + _BF16))              # centered x + bf16 h


def _stats_tile_footprint(ts, c):
    return 2 * ts * c * _F32 + 8 * c * _F32


def _qkv_tile_footprint(tp, c):
    return (2 * tp * c * _F32
            + 2 * c * 3 * c * _BF16
            + 2 * 3 * tp * c * _BF16
            + tp * 3 * c * _F32
            + tp * c * (_F32 + _BF16))


def _resident_kv_footprint(tq, hw, c):
    return (2 * 2 * hw * c * _BF16                  # resident K + V blocks
            + 2 * tq * c * (_F32 + _BF16)           # x residual + q blocks
            + 2 * tq * c * _F32                     # output block
            + 2 * c * c * _BF16                     # Wp^T
            + tq * hw * (_F32 + _BF16)              # scores f32 + probs bf16
            + 2 * tq * c * _F32)                    # attention / proj f32 temps


def _flash_footprint(tq, tk, c):
    return (2 * 2 * tk * c * _BF16
            + 2 * tq * c * (_F32 + _BF16)
            + 2 * tq * c * _F32
            + 2 * c * c * _BF16
            + tq * (2 + c) * _F32                   # m, l, acc scratch
            + tq * tk * (_F32 + _BF16)
            + 2 * tq * c * _F32)


# ----------------------------------------------------------------------------
# Wrappers.
# ----------------------------------------------------------------------------
def attn_block_nhwc(x, params, eps=1e-6, tq=None, tk=None, force_two_pass=False):
    """x: (B, HW, C) float32 — channels on the lane axis (transpose-free path)."""
    B, HW, C = x.shape

    vmem_cap = _tpu_vmem_capacity_bytes()
    vmem_limit = min(int(vmem_cap * 0.85), 100 * 1024 * 1024)
    budget = min(int(vmem_cap * 0.60), vmem_limit - 4 * 1024 * 1024)
    tq_cap = 2048 if vmem_cap >= 96 * 1024 * 1024 else 1024   # gen-aware cap

    def cparams(dims):
        return pltpu.CompilerParams(dimension_semantics=dims,
                                    vmem_limit_bytes=vmem_limit)

    # --- host-side weight prep ------------------------------------------------
    attn_scale = float(C) ** (-0.5)
    gamma = params["gamma"].reshape(1, C).astype(jnp.float32)
    beta = params["beta"].reshape(1, C).astype(jnp.float32)
    # Fused, pre-transposed 1x1-conv weights (bf16 MXU operands, f32 biases);
    # 1/sqrt(C) attention scale folded into Wq / bq.
    wqkv_t = jnp.concatenate(
        [params["wq"].T * attn_scale, params["wk"].T, params["wv"].T],
        axis=1).astype(jnp.bfloat16)                                    # (C, 3C)
    bqkv = jnp.concatenate(
        [params["bq"].reshape(-1) * attn_scale,
         params["bk"].reshape(-1),
         params["bv"].reshape(-1)]).reshape(1, 3 * C).astype(jnp.float32)
    wp_t = params["wp"].T.astype(jnp.bfloat16)                          # (C, C)
    bp = params["bp"].reshape(1, C).astype(jnp.float32)

    qkv_out_shape = (jax.ShapeDtypeStruct((B, HW, C), jnp.bfloat16),) * 3

    # --- stage 1: GroupNorm + q/k/v projection ---------------------------------
    use_fused = (not force_two_pass) and _fused_qkv_footprint(HW, C) <= budget
    if use_fused:
        q, k, v = pl.pallas_call(
            functools.partial(_fused_norm_qkv_kernel, c=C, hw=float(HW),
                              eps=float(eps)),
            out_shape=qkv_out_shape,
            grid_spec=pltpu.PrefetchScalarGridSpec(
                num_scalar_prefetch=0,
                grid=(B,),
                in_specs=[
                    pl.BlockSpec((None, HW, C), lambda b: (b, 0, 0)),   # x slab
                    pl.BlockSpec((1, C), lambda b: (0, 0)),             # gamma
                    pl.BlockSpec((1, C), lambda b: (0, 0)),             # beta
                    _const_spec((C, 3 * C), lambda b: (0, 0)),          # Wqkv^T
                    _const_spec((1, 3 * C), lambda b: (0, 0)),          # b_qkv
                ],
                out_specs=(pl.BlockSpec((None, HW, C), lambda b: (b, 0, 0)),) * 3),
            compiler_params=cparams(("parallel",)),
        )(x, gamma, beta, wqkv_t, bqkv)
    else:
        ts = _largest_tile(HW, 2048, budget, lambda t: _stats_tile_footprint(t, C))
        norm_scale, norm_shift = pl.pallas_call(
            functools.partial(_norm_stats_kernel, hw=float(HW), eps=float(eps)),
            out_shape=(jax.ShapeDtypeStruct((B, 1, C), jnp.float32),
                       jax.ShapeDtypeStruct((B, 1, C), jnp.float32)),
            grid_spec=pltpu.PrefetchScalarGridSpec(
                num_scalar_prefetch=0,
                grid=(B, HW // ts),
                in_specs=[
                    pl.BlockSpec((None, ts, C), lambda b, t: (b, t, 0)),   # x
                    pl.BlockSpec((1, C), lambda b, t: (0, 0)),             # gamma
                    pl.BlockSpec((1, C), lambda b, t: (0, 0)),             # beta
                ],
                out_specs=(pl.BlockSpec((None, 1, C), lambda b, t: (b, 0, 0)),
                           pl.BlockSpec((None, 1, C), lambda b, t: (b, 0, 0))),
                scratch_shapes=[pltpu.VMEM((1, C), jnp.float32),
                                pltpu.VMEM((1, C), jnp.float32)]),
            compiler_params=cparams(("parallel", "arbitrary")),
        )(x, gamma, beta)

        tp = _largest_tile(HW, 1024, budget, lambda t: _qkv_tile_footprint(t, C))
        q, k, v = pl.pallas_call(
            functools.partial(_qkv_kernel, c=C),
            out_shape=qkv_out_shape,
            grid_spec=pltpu.PrefetchScalarGridSpec(
                num_scalar_prefetch=0,
                grid=(B, HW // tp),
                in_specs=[
                    pl.BlockSpec((None, tp, C), lambda b, t: (b, t, 0)),   # x
                    pl.BlockSpec((None, 1, C), lambda b, t: (b, 0, 0)),    # scale
                    pl.BlockSpec((None, 1, C), lambda b, t: (b, 0, 0)),    # shift
                    _const_spec((C, 3 * C), lambda b, t: (0, 0)),          # Wqkv^T
                    _const_spec((1, 3 * C), lambda b, t: (0, 0)),          # b_qkv
                ],
                out_specs=(pl.BlockSpec((None, tp, C), lambda b, t: (b, t, 0)),) * 3),
            compiler_params=cparams(("parallel", "parallel")),
        )(x, norm_scale, norm_shift, wqkv_t, bqkv)

    # --- stage 2: attention + proj_out + residual -------------------------------
    if tq is not None or tk is not None:
        tq_sel = tq if tq is not None else _tile_candidates(HW, tq_cap)[0]
        tk_sel = tk if tk is not None else HW
        assert HW % tq_sel == 0 and HW % tk_sel == 0, (HW, tq_sel, tk_sel)
        assert (tq_sel % 8 == 0 or tq_sel == HW), tq_sel
        assert (tk_sel % 8 == 0 or tk_sel == HW), tk_sel
    else:
        # Prefer full per-batch K/V residency (DMA'd once per batch).
        tq_sel, tk_sel = None, None
        for t in _tile_candidates(HW, tq_cap):
            if _resident_kv_footprint(t, HW, C) <= budget:
                tq_sel, tk_sel = t, HW
                break
        if tq_sel is None:
            # Flash fallback: the q tile is the lever on K/V HBM traffic
            # (K+V re-read (HW/tq) times), so size it first, then the kv tile.
            tk_ref = _tile_candidates(HW, 512)[0]
            tq_sel = _largest_tile(HW, tq_cap, budget,
                                   lambda t: _flash_footprint(t, tk_ref, C))
            tk_sel = _largest_tile(HW, HW, budget,
                                   lambda t: _flash_footprint(tq_sel, t, C))
        # Keep the "parallel" grid extent >= 2 so both v7x TensorCores stay busy.
        if B * (HW // tq_sel) < 2:
            smaller = [t for t in _tile_candidates(HW, HW) if t < tq_sel]
            if smaller:
                tq_sel = smaller[0]

    if tk_sel == HW:
        out = pl.pallas_call(
            _attn_resident_kv_kernel,
            out_shape=jax.ShapeDtypeStruct((B, HW, C), x.dtype),
            grid_spec=pltpu.PrefetchScalarGridSpec(
                num_scalar_prefetch=0,
                grid=(B, HW // tq_sel),
                in_specs=[
                    pl.BlockSpec((None, tq_sel, C), lambda b, qi: (b, qi, 0)),  # x
                    pl.BlockSpec((None, tq_sel, C), lambda b, qi: (b, qi, 0)),  # q
                    _const_spec((None, HW, C), lambda b, qi: (b, 0, 0)),        # K resident
                    _const_spec((None, HW, C), lambda b, qi: (b, 0, 0)),        # V resident
                    _const_spec((C, C), lambda b, qi: (0, 0)),                  # Wp^T
                    _const_spec((1, C), lambda b, qi: (0, 0)),                  # bp
                ],
                out_specs=pl.BlockSpec((None, tq_sel, C), lambda b, qi: (b, qi, 0))),
            compiler_params=cparams(("parallel", "parallel")),
        )(x, q, k, v, wp_t, bp)
    else:
        out = pl.pallas_call(
            _flash_attn_kernel,
            out_shape=jax.ShapeDtypeStruct((B, HW, C), x.dtype),
            grid_spec=pltpu.PrefetchScalarGridSpec(
                num_scalar_prefetch=0,
                grid=(B, HW // tq_sel, HW // tk_sel),
                in_specs=[
                    _const_spec((None, tq_sel, C), lambda b, qi, kj: (b, qi, 0)),  # x (kv-invariant)
                    _const_spec((None, tq_sel, C), lambda b, qi, kj: (b, qi, 0)),  # q (kv-invariant)
                    pl.BlockSpec((None, tk_sel, C), lambda b, qi, kj: (b, kj, 0)),  # k
                    pl.BlockSpec((None, tk_sel, C), lambda b, qi, kj: (b, kj, 0)),  # v
                    _const_spec((C, C), lambda b, qi, kj: (0, 0)),                  # Wp^T
                    _const_spec((1, C), lambda b, qi, kj: (0, 0)),                  # bp
                ],
                out_specs=pl.BlockSpec((None, tq_sel, C),
                                       lambda b, qi, kj: (b, qi, 0)),
                scratch_shapes=[pltpu.VMEM((tq_sel, 1), jnp.float32),   # m
                                pltpu.VMEM((tq_sel, 1), jnp.float32),   # l
                                pltpu.VMEM((tq_sel, C), jnp.float32)]), # acc
            compiler_params=cparams(("parallel", "parallel", "arbitrary")),
        )(x, q, k, v, wp_t, bp)

    return out


def attn_block(x_nchw, params, eps=1e-6, tq=None, tk=None, force_two_pass=False):
    """PyTorch-layout entry point: x_nchw (B, C, H, W) float32.

    The two relayouts below are full HBM read+write passes; callers that keep
    activations in (B, HW, C) should use attn_block_nhwc directly.
    """
    B, C, H, W = x_nchw.shape
    x = jnp.transpose(x_nchw, (0, 2, 3, 1)).reshape(B, H * W, C)
    out = attn_block_nhwc(x, params, eps=eps, tq=tq, tk=tk,
                          force_two_pass=force_two_pass)
    return jnp.transpose(out.reshape(B, H, W, C), (0, 3, 1, 2))


# ----------------------------------------------------------------------------
# Parameters + pure-JAX reference (mirrors the PyTorch forward).
# ----------------------------------------------------------------------------
def init_params(key, C):
    ks = jax.random.split(key, 8)
    def w(k):
        return jax.random.normal(k, (C, C), jnp.float32) * 0.1
    def b(k):
        return jax.random.normal(k, (C, 1), jnp.float32) * 0.01
    return {
        "gamma": jnp.ones((C, 1), jnp.float32),
        "beta": jnp.zeros((C, 1), jnp.float32),
        "wq": w(ks[0]), "bq": b(ks[1]),
        "wk": w(ks[2]), "bk": b(ks[3]),
        "wv": w(ks[4]), "bv": b(ks[5]),
        "wp": w(ks[6]), "bp": b(ks[7]),
    }


def attn_block_ref(x_nchw, params, eps=1e-6):
    B, C, H, W = x_nchw.shape
    HW = H * W
    x = x_nchw.reshape(B, C, HW).astype(jnp.float32)
    mean = jnp.mean(x, axis=2, keepdims=True)
    var = jnp.mean((x - mean) ** 2, axis=2, keepdims=True)
    h = (x - mean) / jnp.sqrt(var + eps)
    h = h * params["gamma"][None] + params["beta"][None]
    q = jnp.einsum("oc,bcp->bop", params["wq"], h) + params["bq"][None]
    k = jnp.einsum("oc,bcp->bop", params["wk"], h) + params["bk"][None]
    v = jnp.einsum("oc,bcp->bop", params["wv"], h) + params["bv"][None]
    w_ = jnp.einsum("bci,bcj->bij", q, k) * (float(C) ** -0.5)
    w_ = jax.nn.softmax(w_, axis=2)
    h_att = jnp.einsum("bcj,bij->bci", v, w_)
    out = jnp.einsum("oc,bcp->bop", params["wp"], h_att) + params["bp"][None]
    return (x + out).reshape(B, C, H, W)


if __name__ == "__main__":
    key = jax.random.PRNGKey(0)
    k_x, k_p = jax.random.split(key)

    B, C, H, W = 2, 4, 16, 16
    x = jax.random.normal(k_x, (B, C, H, W), jnp.float32)
    params = init_params(k_p, C)
    y_ref = attn_block_ref(x, params)

    # Path 1 (default plan): fused GroupNorm+QKV kernel + resident-K/V attention.
    y1 = jax.block_until_ready(attn_block(x, params))
    # Path 2 (forced fallbacks): tiled stats + tiled QKV kernels and the
    # online-softmax flash-attention kernel (2 query tiles x 2 kv tiles).
    y2 = jax.block_until_ready(
        attn_block(x, params, tq=128, tk=128, force_two_pass=True))

    for y in (y1, y2):
        assert y.shape == (B, C, H, W)
        err = float(jnp.max(jnp.abs(y - y_ref)))
        # bf16 MXU operands -> loose-but-meaningful tolerance.
        assert err < 2e-2, err

    print("KERNEL_OK")
</pallas_src>

<mosaic_0001>
module attributes {stable_mosaic.version = 11 : i64} {
  func.func @_copy(%arg0: i32, %arg1: memref<8x128xf32, #tpu.memory_space<vmem>>, %arg2: memref<8x128xf32, #tpu.memory_space<vmem>>) attributes {dimension_semantics = [#tpu.dimension_semantics<arbitrary>], iteration_bounds = array<i64: 2>, scalar_prefetch = 0 : i64, scratch_operands = 0 : i64, tpu.core_type = #tpu.core_type<tc>, window_params = [{pipeline_mode = #tpu.pipeline_mode<synchronous>, transform_indices = @transform_0, window_bounds = array<i64: 8, 128>}, {transform_indices = @transform_1, window_bounds = array<i64: 8, 128>}]} {
    %c0 = arith.constant 0 : index
    %c0_0 = arith.constant 0 : index
    %0 = vector.load %arg1[%c0, %c0_0] : memref<8x128xf32, #tpu.memory_space<vmem>>, vector<8x128xf32>
    %c0_1 = arith.constant 0 : index
    %c0_2 = arith.constant 0 : index
    %1 = vector.load %arg2[%c0_1, %c0_2] : memref<8x128xf32, #tpu.memory_space<vmem>>, vector<8x128xf32>
    tpu.vector_store %arg2[%c0_1, %c0_2], %0 {strides = array<i32>} : memref<8x128xf32, #tpu.memory_space<vmem>>, vector<8x128xf32>,
    return
  }
  func.func @transform_0(%arg0: i32) -> (i32, i32) {
    %c0_i32 = arith.constant 0 : i32
    %c0_i32_0 = arith.constant 0 : i32
    return %arg0, %c0_i32 : i32, i32
  }
  func.func @transform_1(%arg0: i32) -> (i32, i32) {
    %c0_i32 = arith.constant 0 : i32
    %c0_i32_0 = arith.constant 0 : i32
    return %arg0, %c0_i32 : i32, i32
  }
}

module attributes {stable_mosaic.version = 11 : i64} {
  func.func @_fused_norm_qkv_kernel(%arg0: i32, %arg1: memref<1x256x4xf32, #tpu.memory_space<vmem>>, %arg2: memref<1x4xf32, #tpu.memory_space<vmem>>, %arg3: memref<1x4xf32, #tpu.memory_space<vmem>>, %arg4: memref<4x12xbf16, #tpu.memory_space<vmem>>, %arg5: memref<1x12xf32, #tpu.memory_space<vmem>>, %arg6: memref<1x256x4xbf16, #tpu.memory_space<vmem>>, %arg7: memref<1x256x4xbf16, #tpu.memory_space<vmem>>, %arg8: memref<1x256x4xbf16, #tpu.memory_space<vmem>>) attributes {dimension_semantics = [#tpu.dimension_semantics<parallel>], iteration_bounds = array<i64: 2>, scalar_prefetch = 0 : i64, scratch_operands = 0 : i64, tpu.core_type = #tpu.core_type<tc>, window_params = [{transform_indices = @transform_0, window_bounds = array<i64: 1, 256, 4>}, {pipeline_mode = #tpu.pipeline_mode<synchronous>, transform_indices = @transform_1, window_bounds = array<i64: 1, 4>}, {pipeline_mode = #tpu.pipeline_mode<synchronous>, transform_indices = @transform_2, window_bounds = array<i64: 1, 4>}, {pipeline_mode = #tpu.pipeline_mode<synchronous>, transform_indices = @transform_3, window_bounds = array<i64: 4, 12>}, {pipeline_mode = #tpu.pipeline_mode<synchronous>, transform_indices = @transform_4, window_bounds = array<i64: 1, 12>}, {transform_indices = @transform_5, window_bounds = array<i64: 1, 256, 4>}, {transform_indices = @transform_6, window_bounds = array<i64: 1, 256, 4>}, {transform_indices = @transform_7, window_bounds = array<i64: 1, 256, 4>}]} {
    %c0 = arith.constant 0 : index
    %c0_0 = arith.constant 0 : index
    %c0_1 = arith.constant 0 : index
    %0 = vector.load %arg1[%c0, %c0_0, %c0_1] : memref<1x256x4xf32, #tpu.memory_space<vmem>>, vector<1x256x4xf32>
    %1 = vector.shape_cast %0 : vector<1x256x4xf32> to vector<256x4xf32>
    %cst = arith.constant dense<0.000000e+00> : vector<4xf32>
    %2 = vector.multi_reduction <add>, %1, %cst [0] : vector<256x4xf32> to vector<4xf32>
    %3 = vector.shape_cast %2 : vector<4xf32> to vector<1x4xf32>
    %cst_2 = arith.constant 3.906250e-03 : f32
    %4 = vector.broadcast %cst_2 : f32 to vector<1x4xf32>
    %5 = arith.mulf %3, %4 : vector<1x4xf32>
    %6 = vector.broadcast %5 : vector<1x4xf32> to vector<256x4xf32>
    %7 = arith.subf %1, %6 : vector<256x4xf32>
    %8 = arith.mulf %7, %7 : vector<256x4xf32>
    %cst_3 = arith.constant dense<0.000000e+00> : vector<4xf32>
    %9 = vector.multi_reduction <add>, %8, %cst_3 [0] : vector<256x4xf32> to vector<4xf32>
    %10 = vector.shape_cast %9 : vector<4xf32> to vector<1x4xf32>
    %cst_4 = arith.constant 3.906250e-03 : f32
    %11 = vector.broadcast %cst_4 : f32 to vector<1x4xf32>
    %12 = arith.mulf %10, %11 : vector<1x4xf32>
    %cst_5 = arith.constant 9.99999997E-7 : f32
    %13 = vector.broadcast %cst_5 : f32 to vector<1x4xf32>
    %14 = arith.addf %12, %13 : vector<1x4xf32>
    %15 = math.rsqrt %14 : vector<1x4xf32>
    %c0_6 = arith.constant 0 : index
    %c0_7 = arith.constant 0 : index
    %16 = vector.load %arg2[%c0_6, %c0_7] : memref<1x4xf32, #tpu.memory_space<vmem>>, vector<1x4xf32>
    %17 = arith.mulf %16, %15 : vector<1x4xf32>
    %18 = vector.broadcast %17 : vector<1x4xf32> to vector<256x4xf32>
    %19 = arith.mulf %7, %18 : vector<256x4xf32>
    %c0_8 = arith.constant 0 : index
    %c0_9 = arith.constant 0 : index
    %20 = vector.load %arg3[%c0_8, %c0_9] : memref<1x4xf32, #tpu.memory_space<vmem>>, vector<1x4xf32>
    %21 = vector.broadcast %20 : vector<1x4xf32> to vector<256x4xf32>
    %22 = arith.addf %19, %21 : vector<256x4xf32>
    %23 = arith.truncf %22 : vector<256x4xf32> to vector<256x4xbf16>
    %c0_10 = arith.constant 0 : index
    %c0_11 = arith.constant 0 : index
    %24 = vector.load %arg4[%c0_10, %c0_11] : memref<4x12xbf16, #tpu.memory_space<vmem>>, vector<4x12xbf16>
    %cst_12 = arith.constant dense<0.000000e+00> : vector<256x12xf32>
    %25 = tpu.matmul %23, %24, %cst_12 {dimension_numbers = #tpu.dot_dimension_numbers<[1], [0], [0], [1], [0, 0, 1, 1], [], []>} : vector<256x4xbf16>, vector<4x12xbf16>, vector<256x12xf32> -> vector<256x12xf32>
    %c0_13 = arith.constant 0 : index
    %c0_14 = arith.constant 0 : index
    %26 = vector.load %arg5[%c0_13, %c0_14] : memref<1x12xf32, #tpu.memory_space<vmem>>, vector<1x12xf32>
    %27 = vector.broadcast %26 : vector<1x12xf32> to vector<256x12xf32>
    %28 = arith.addf %25, %27 : vector<256x12xf32>
    %29 = vector.extract_strided_slice %28 {offsets = [0, 0], sizes = [256, 4], strides = [1, 1]} : vector<256x12xf32> to vector<256x4xf32>
    %30 = arith.truncf %29 : vector<256x4xf32> to vector<256x4xbf16>
    %c0_15 = arith.constant 0 : index
    %c0_16 = arith.constant 0 : index
    %c0_17 = arith.constant 0 : index
    %31 = vector.load %arg6[%c0_15, %c0_16, %c0_17] : memref<1x256x4xbf16, #tpu.memory_space<vmem>>, vector<1x256x4xbf16>
    %32 = vector.shape_cast %31 : vector<1x256x4xbf16> to vector<256x4xbf16>
    %33 = vector.shape_cast %30 : vector<256x4xbf16> to vector<1x256x4xbf16>
    tpu.vector_store %arg6[%c0_15, %c0_16, %c0_17], %33 {strides = array<i32>} : memref<1x256x4xbf16, #tpu.memory_space<vmem>>, vector<1x256x4xbf16>,
    %34 = vector.extract_strided_slice %28 {offsets = [0, 4], sizes = [256, 4], strides = [1, 1]} : vector<256x12xf32> to vector<256x4xf32>
    %35 = arith.truncf %34 : vector<256x4xf32> to vector<256x4xbf16>
    %c0_18 = arith.constant 0 : index
    %c0_19 = arith.constant 0 : index
    %c0_20 = arith.constant 0 : index
    %36 = vector.load %arg7[%c0_18, %c0_19, %c0_20] : memref<1x256x4xbf16, #tpu.memory_space<vmem>>, vector<1x256x4xbf16>
    %37 = vector.shape_cast %36 : vector<1x256x4xbf16> to vector<256x4xbf16>
    %38 = vector.shape_cast %35 : vector<256x4xbf16> to vector<1x256x4xbf16>
    tpu.vector_store %arg7[%c0_18, %c0_19, %c0_20], %38 {strides = array<i32>} : memref<1x256x4xbf16, #tpu.memory_space<vmem>>, vector<1x256x4xbf16>,
    %39 = vector.extract_strided_slice %28 {offsets = [0, 8], sizes = [256, 4], strides = [1, 1]} : vector<256x12xf32> to vector<256x4xf32>
    %40 = arith.truncf %39 : vector<256x4xf32> to vector<256x4xbf16>
    %c0_21 = arith.constant 0 : index
    %c0_22 = arith.constant 0 : index
    %c0_23 = arith.constant 0 : index
    %41 = vector.load %arg8[%c0_21, %c0_22, %c0_23] : memref<1x256x4xbf16, #tpu.memory_space<vmem>>, vector<1x256x4xbf16>
    %42 = vector.shape_cast %41 : vector<1x256x4xbf16> to vector<256x4xbf16>
    %43 = vector.shape_cast %40 : vector<256x4xbf16> to vector<1x256x4xbf16>
    tpu.vector_store %arg8[%c0_21, %c0_22, %c0_23], %43 {strides = array<i32>} : memref<1x256x4xbf16, #tpu.memory_space<vmem>>, vector<1x256x4xbf16>,
    return
  }
  func.func @transform_0(%arg0: i32) -> (i32, i32, i32) {
    %c0_i32 = arith.constant 0 : i32
    %c0_i32_0 = arith.constant 0 : i32
    %c0_i32_1 = arith.constant 0 : i32
    return %arg0, %c0_i32, %c0_i32_0 : i32, i32, i32
  }
  func.func @transform_1(%arg0: i32) -> (i32, i32) {
    %c0_i32 = arith.constant 0 : i32
    %c0_i32_0 = arith.constant 0 : i32
    %c0_i32_1 = arith.constant 0 : i32
    return %c0_i32, %c0_i32_0 : i32, i32
  }
  func.func @transform_2(%arg0: i32) -> (i32, i32) {
    %c0_i32 = arith.constant 0 : i32
    %c0_i32_0 = arith.constant 0 : i32
    %c0_i32_1 = arith.constant 0 : i32
    return %c0_i32, %c0_i32_0 : i32, i32
  }
  func.func @transform_3(%arg0: i32) -> (i32, i32) {
    %c0_i32 = arith.constant 0 : i32
    %c0_i32_0 = arith.constant 0 : i32
    %c0_i32_1 = arith.constant 0 : i32
    return %c0_i32, %c0_i32_0 : i32, i32
  }
  func.func @transform_4(%arg0: i32) -> (i32, i32) {
    %c0_i32 = arith.constant 0 : i32
    %c0_i32_0 = arith.constant 0 : i32
    %c0_i32_1 = arith.constant 0 : i32
    return %c0_i32, %c0_i32_0 : i32, i32
  }
  func.func @transform_5(%arg0: i32) -> (i32, i32, i32) {
    %c0_i32 = arith.constant 0 : i32
    %c0_i32_0 = arith.constant 0 : i32
    %c0_i32_1 = arith.constant 0 : i32
    return %arg0, %c0_i32, %c0_i32_0 : i32, i32, i32
  }
  func.func @transform_6(%arg0: i32) -> (i32, i32, i32) {
    %c0_i32 = arith.constant 0 : i32
    %c0_i32_0 = arith.constant 0 : i32
    %c0_i32_1 = arith.constant 0 : i32
    return %arg0, %c0_i32, %c0_i32_0 : i32, i32, i32
  }
  func.func @transform_7(%arg0: i32) -> (i32, i32, i32) {
    %c0_i32 = arith.constant 0 : i32
    %c0_i32_0 = arith.constant 0 : i32
    %c0_i32_1 = arith.constant 0 : i32
    return %arg0, %c0_i32, %c0_i32_0 : i32, i32, i32
  }
}

</mosaic_0001>

<llo_original>
// kernel: tpu_custom_call.1
$region0: #{tpu_custom_call.1}
  #allocation0 [shape = 'u32[]', space=smem, size = 0x4, offset = 0x4, fixed_abs, tag = 'smem constant byte address 0x4 - core index']
  #allocation1 [shape = 'u32[144,128]{1,0:T(1,128)}', space=vmem, size = 0x12000, scoped, tag = 'internal scratch']
  %s0 = inlined_call_operand.hbm [shape: f32[16,128], index: 0, kind: input, shape index: {}]
  %s1 = inlined_call_operand.hbm [shape: f32[16,128], index: 1, kind: output, shape index: {}]
  %s2 = sld [smem:[#allocation0]]
  $region41: #{tpu_custom_call.1} parent=0
    _
  %s4 = ssub.s32 1, %s2
  %s5 = scalar_select 0, %s4, %s2
  $region1: #{tpu_custom_call.1} parent=0
    #allocation2 [shape = 'u8[4096]{0}', space=vmem, size = 0x1000, scoped, tag = 'input window, operand 0, single buffered']
    #allocation3 [shape = 's32[2]{0}', space=sflag, size = 0x8, scoped, tag = 'scoped memory for tpu_custom_call.1']
    #allocation4 [shape = 's32[2]{0}', space=sflag, size = 0x8, scoped, tag = 'scoped memory for tpu_custom_call.1']
    #allocation5 [shape = 'u8[8192]{0}', space=vmem, size = 0x2000, scoped, tag = 'output window, operand 0']
    %6 = vsyncpa [#allocation3], 0
    %7 = vsyncpa [#allocation4], 0
    %s8 = scalar_lea.sflag [#allocation4], 1
    %9 = vsyncpa %s8, 0
    loop: start=0, step=1, limit=4
    $region2: #{tpu_custom_call.1} parent=1 // loop_pre_header
      _
    $region3: #{tpu_custom_call.1} parent=1 // loop_header
      %s11 = sphi 0, %s15
      %p12 = scmp.ge.s32.totalorder %s11, 4
      %s21 = sphi 0, %s23
      %s24 = sphi 0, %s21
      %s25 = sphi 0, %s24
      %s41 = sphi 0, %s25
      %s47 = sphi 0, %s49
      %s50 = sphi 0, %s47
      %s51 = sphi 0, %s50
      %s67 = sphi 0, %s51
    $region4: #{tpu_custom_call.1} parent=1 // loop_header_branch
      %14 = sbr.rel (%p12) target = $region8
    $region5: #{tpu_custom_call.1} parent=1 // loop_body
      %s16 = ssub.s32 %s11, 1
      %s17 = ssub.s32 %s11, 2
      %s18 = sadd.s32 %s11, 1
      %s19 = ssub.s32 %s11, %s18
      %p20 = scmp.eq.s32.totalorder %s19, 0
      %s22 = sadd.s32 %s21, 1
      %s23 = scalar_select %p20, %s21, %s22
      %p26 = pneg %p20
      %p27 = scmp.eq.s32.totalorder %s11, 1
      %p28 = por %p26, %p27
      %p29 = scmp.ne.s32.totalorder %s21, %s24
      %p30 = scmp.eq.s32.totalorder %s11, 0
      %p31 = por %p29, %p30
      %p32 = scmp.ne.s32.totalorder %s21, %s24
      %p33 = scmp.eq.s32.totalorder %s16, 1
      %p34 = por %p32, %p33
      %p35 = scmp.ne.s32.totalorder %s24, %s25
      %p36 = scmp.eq.s32.totalorder %s16, 0
      %p37 = por %p35, %p36
      %p38 = scmp.ne.s32.totalorder %s24, %s25
      %p39 = scmp.eq.s32.totalorder %s17, 1
      %p40 = por %p38, %p39
      %p42 = scmp.ne.s32.totalorder %s25, %s41
      %p43 = scmp.eq.s32.totalorder %s17, 0
      %p44 = por %p42, %p43
      %s45 = ssub.s32 %s11, %s18
      %p46 = scmp.eq.s32.totalorder %s45, 0
      %s48 = sadd.s32 %s47, 1
      %s49 = scalar_select %p46, %s47, %s48
      %p52 = pneg %p46
      %p53 = scmp.eq.s32.totalorder %s11, 1
      %p54 = por %p52, %p53
      %p55 = scmp.ne.s32.totalorder %s47, %s50
      %p56 = scmp.eq.s32.totalorder %s11, 0
      %p57 = por %p55, %p56
      %p58 = scmp.ne.s32.totalorder %s47, %s50
      %p59 = scmp.eq.s32.totalorder %s16, 1
      %p60 = por %p58, %p59
      %p61 = scmp.ne.s32.totalorder %s50, %s51
      %p62 = scmp.eq.s32.totalorder %s16, 0
      %p63 = por %p61, %p62
      %p64 = scmp.ne.s32.totalorder %s50, %s51
      %p65 = scmp.eq.s32.totalorder %s17, 1
      %p66 = por %p64, %p65
      %p68 = scmp.ne.s32.totalorder %s51, %s67
      %p69 = scmp.eq.s32.totalorder %s17, 0
      %p70 = por %p68, %p69
      %p71 = scmp.le.s32.totalorder 1, %s11
      %p72 = scmp.lt.s32.totalorder %s11, 3
      %p73 = pnand %p71, %p72
      %p74 = pneg %p73
      // Predicated region
      $region9: #{tpu_custom_call.1} parent=5 // pred_check
        _
      $region10: #{tpu_custom_call.1} parent=5 // pred_check_branch
        %76 = sbr.rel (%p73) target = $region12
      $region11: #{tpu_custom_call.1} parent=5 // pred_region
        %s77 = ssub.s32 %s11, 1
        // Predicated region
        $region13: #{tpu_custom_call.1} parent=11 // pred_check
          %p78 = pneg %p37
        $region14: #{tpu_custom_call.1} parent=11 // pred_check_branch
          %80 = sbr.rel (%p78) target = $region16
        $region15: #{tpu_custom_call.1} parent=11 // pred_region
          %s82 = ssub.s32 128, 128
          %83 = vsyncadd [#allocation3], %s82
          %s84 = smul.addr %s16, 128
          %s85 = scalar_lea.hbm %s0, %s84
          %s87 = sshll.u32 [#allocation2], 4
          %s88 = int_to_ptr.vmem [resolvable:$true] %s87
          %90 = dma.hbm_to_vmem [thread:$0]  %s85, 128, %s88, [#allocation3]
        $region16: #{tpu_custom_call.1} parent=11 // pred_fallthru
          _
      $region12: #{tpu_custom_call.1} parent=5 // pred_fallthru
        _
      %p91 = scmp.lt.s32.totalorder %s11, 2
      // Predicated region
      $region17: #{tpu_custom_call.1} parent=5 // pred_check
        %p92 = pneg %p91
      $region18: #{tpu_custom_call.1} parent=5 // pred_check_branch
        %94 = sbr.rel (%p92) target = $region20
      $region19: #{tpu_custom_call.1} parent=5 // pred_region
        _
      $region20: #{tpu_custom_call.1} parent=5 // pred_fallthru
        _
      %p95 = scmp.le.s32.totalorder 1, %s11
      %p96 = scmp.lt.s32.totalorder %s11, 3
      %p97 = pnand %p95, %p96
      %p98 = pneg %p97
      // Predicated region
      $region21: #{tpu_custom_call.1} parent=5 // pred_check
        _
      $region22: #{tpu_custom_call.1} parent=5 // pred_check_branch
        %100 = sbr.rel (%p97) target = $region24
      $region23: #{tpu_custom_call.1} parent=5 // pred_region
        %s101 = ssub.s32 %s11, 1
        // Predicated region
        $region25: #{tpu_custom_call.1} parent=23 // pred_check
          %p102 = pneg %p37
        $region26: #{tpu_custom_call.1} parent=23 // pred_check_branch
          %104 = sbr.rel (%p102) target = $region28
        $region27: #{tpu_custom_call.1} parent=23 // pred_region
          %105 = dma.done [#allocation3], 128
        $region28: #{tpu_custom_call.1} parent=23 // pred_fallthru
          _
        %p106 = pneg %p37
        %p107 = pneg %p34
        %p108 = pneg %p63
        %p109 = pneg %p60
        %s110 = sand.u32 %s50, 1
        %s111 = scalar_lea.sflag [#allocation4], %s110
        %s112 = sand.u32 %s50, 1
        %s113 = smul.addr %s112, 8
        %s114 = scalar_lea.vmem [#allocation5], %s113
        %v115 = vld [vmem:[#allocation2] sm:$0xff]
        %116 = vst [vmem:[%s114] sm:$0xff] %v115
        %s117 = sand.u32 %s50, 1
        %s118 = scalar_lea.sflag [#allocation4], %s117
        %s119 = sand.u32 %s50, 1
        %s120 = smul.addr %s119, 8
        %s121 = scalar_lea.vmem [#allocation5], %s120
        // Predicated region
        $region29: #{tpu_custom_call.1} parent=23 // pred_check
          %p122 = pneg %p60
        $region30: #{tpu_custom_call.1} parent=23 // pred_check_branch
          %124 = sbr.rel (%p122) target = $region32
        $region31: #{tpu_custom_call.1} parent=23 // pred_region
          %s126 = ssub.s32 128, 128
          %127 = vsyncadd %s118, %s126
          %s128 = smul.addr %s16, 128
          %s129 = scalar_lea.hbm %s1, %s128
          %s131 = sshll.u32 %s121, 4
          %s132 = int_to_ptr.vmem [resolvable:$true] %s131
          %134 = dma.vmem_to_hbm [thread:$0]  %s132, 128, %s129, %s118
        $region32: #{tpu_custom_call.1} parent=23 // pred_fallthru
          _
      $region24: #{tpu_custom_call.1} parent=5 // pred_fallthru
        _
      %p135 = scmp.le.s32.totalorder 2, %s11
      // Predicated region
      $region33: #{tpu_custom_call.1} parent=5 // pred_check
        %p136 = pneg %p135
      $region34: #{tpu_custom_call.1} parent=5 // pred_check_branch
        %138 = sbr.rel (%p136) target = $region36
      $region35: #{tpu_custom_call.1} parent=5 // pred_region
        %s139 = ssub.s32 %s11, 2
        // Predicated region
        $region37: #{tpu_custom_call.1} parent=35 // pred_check
          %p140 = pneg %p66
        $region38: #{tpu_custom_call.1} parent=35 // pred_check_branch
          %142 = sbr.rel (%p140) target = $region40
        $region39: #{tpu_custom_call.1} parent=35 // pred_region
          %s143 = sand.u32 %s51, 1
          %s144 = scalar_lea.sflag [#allocation4], %s143
          %s145 = sand.u32 %s51, 1
          %s146 = smul.addr %s145, 8
          %s147 = scalar_lea.vmem [#allocation5], %s146
          %148 = dma.done %s144, 128
        $region40: #{tpu_custom_call.1} parent=35 // pred_fallthru
          _
      $region36: #{tpu_custom_call.1} parent=5 // pred_fallthru
        _
    $region6: #{tpu_custom_call.1} parent=1 // loop_footer
      %s15 = sadd.s32 1, %s11
    $region7: #{tpu_custom_call.1} parent=1 // loop_footer_branch
      %10 = sbr.rel target = $region3
    $region8: #{tpu_custom_call.1} parent=1 // loop_exit
      _
    %149 = vsyncpa [#allocation3], 1
    %s150 = scalar_lea.sflag [#allocation3], 1
    %151 = vsyncpa %s150, 1
    %152 = vsyncpa [#allocation4], 1
    %s153 = scalar_lea.sflag [#allocation4], 1
    %154 = vsyncpa %s153, 1

// kernel: tpu_custom_call.1
$region0: #{tpu_custom_call.1}
  #allocation0 [shape = 'u32[]', space=smem, size = 0x4, offset = 0x4, fixed_abs, tag = 'smem constant byte address 0x4 - core index']
  #allocation1 [shape = 'u32[144,128]{1,0:T(1,128)}', space=vmem, size = 0x12000, scoped, tag = 'internal scratch']
  %s0 = inlined_call_operand.vmem [shape: f32[2,256,4], index: 0, kind: input, shape index: {}]
  %s1 = inlined_call_operand.vmem [shape: f32[1,4], index: 1, kind: input, shape index: {}]
  %s2 = inlined_call_operand.vmem [shape: f32[1,4], index: 2, kind: input, shape index: {}]
  %s3 = inlined_call_operand.vmem [shape: bf16[4,12], index: 3, kind: input, shape index: {}]
  %s4 = inlined_call_operand.vmem [shape: f32[1,12], index: 4, kind: input, shape index: {}]
  %s5 = inlined_call_operand.vmem [shape: bf16[2,256,4], index: 5, kind: output, shape index: {0}]
  %s6 = inlined_call_operand.vmem [shape: bf16[2,256,4], index: 6, kind: output, shape index: {1}]
  %s7 = inlined_call_operand.vmem [shape: bf16[2,256,4], index: 7, kind: output, shape index: {2}]
  %8 = xla_tuple %s5, %s6, %s7
  %s9 = sld [smem:[#allocation0]]
  $region69: #{tpu_custom_call.1} parent=0
    _
  %s11 = ssub.s32 1, %s9
  %s12 = scalar_select 0, %s11, %s9
  loop: start=0, step=1, limit=4
  $region2: #{tpu_custom_call.1} parent=0 // loop_pre_header
    _
  $region3: #{tpu_custom_call.1} parent=0 // loop_header
    %s14 = sphi 0, %s18
    %p15 = scmp.ge.s32.totalorder %s14, 4
    %s24 = sphi 0, %s26
    %s27 = sphi 0, %s24
    %s28 = sphi 0, %s27
    %s44 = sphi 0, %s28
    %s48 = sphi 0, %s48
    %s50 = sphi 0, %s48
    %s51 = sphi 0, %s50
    %s65 = sphi 0, %s51
    %s69 = sphi 0, %s69
    %s71 = sphi 0, %s69
    %s72 = sphi 0, %s71
    %s86 = sphi 0, %s72
    %s90 = sphi 0, %s90
    %s92 = sphi 0, %s90
    %s93 = sphi 0, %s92
    %s107 = sphi 0, %s93
    %s111 = sphi 0, %s111
    %s113 = sphi 0, %s111
    %s114 = sphi 0, %s113
    %s128 = sphi 0, %s114
    %s134 = sphi 0, %s136
    %s137 = sphi 0, %s134
    %s138 = sphi 0, %s137
    %s154 = sphi 0, %s138
    %s160 = sphi 0, %s162
    %s163 = sphi 0, %s160
    %s164 = sphi 0, %s163
    %s180 = sphi 0, %s164
    %s186 = sphi 0, %s188
    %s189 = sphi 0, %s186
    %s190 = sphi 0, %s189
    %s206 = sphi 0, %s190
  $region4: #{tpu_custom_call.1} parent=0 // loop_header_branch
    %17 = sbr.rel (%p15) target = $region8
  $region5: #{tpu_custom_call.1} parent=0 // loop_body
    %s19 = ssub.s32 %s14, 1
    %s20 = ssub.s32 %s14, 2
    %s21 = sadd.s32 %s14, 1
    %s22 = ssub.s32 %s14, %s21
    %p23 = scmp.eq.s32.totalorder %s22, 0
    %s25 = sadd.s32 %s24, 1
    %s26 = scalar_select %p23, %s24, %s25
    %p29 = pneg %p23
    %p30 = scmp.eq.s32.totalorder %s14, 1
    %p31 = por %p29, %p30
    %p32 = scmp.ne.s32.totalorder %s24, %s27
    %p33 = scmp.eq.s32.totalorder %s14, 0
    %p34 = por %p32, %p33
    %p35 = scmp.ne.s32.totalorder %s24, %s27
    %p36 = scmp.eq.s32.totalorder %s19, 1
    %p37 = por %p35, %p36
    %p38 = scmp.ne.s32.totalorder %s27, %s28
    %p39 = scmp.eq.s32.totalorder %s19, 0
    %p40 = por %p38, %p39
    %p41 = scmp.ne.s32.totalorder %s27, %s28
    %p42 = scmp.eq.s32.totalorder %s20, 1
    %p43 = por %p41, %p42
    %p45 = scmp.ne.s32.totalorder %s28, %s44
    %p46 = scmp.eq.s32.totalorder %s20, 0
    %p47 = por %p45, %p46
    %s49 = sadd.s32 %s48, 1
    %p52 = scmp.eq.s32.totalorder %s14, 1
    %p53 = scmp.ne.s32.totalorder %s48, %s50
    %p54 = scmp.eq.s32.totalorder %s14, 0
    %p55 = por %p53, %p54
    %p56 = scmp.ne.s32.totalorder %s48, %s50
    %p57 = scmp.eq.s32.totalorder %s19, 1
    %p58 = por %p56, %p57
    %p59 = scmp.ne.s32.totalorder %s50, %s51
    %p60 = scmp.eq.s32.totalorder %s19, 0
    %p61 = por %p59, %p60
    %p62 = scmp.ne.s32.totalorder %s50, %s51
    %p63 = scmp.eq.s32.totalorder %s20, 1
    %p64 = por %p62, %p63
    %p66 = scmp.ne.s32.totalorder %s51, %s65
    %p67 = scmp.eq.s32.totalorder %s20, 0
    %p68 = por %p66, %p67
    %s70 = sadd.s32 %s69, 1
    %p73 = scmp.eq.s32.totalorder %s14, 1
    %p74 = scmp.ne.s32.totalorder %s69, %s71
    %p75 = scmp.eq.s32.totalorder %s14, 0
    %p76 = por %p74, %p75
    %p77 = scmp.ne.s32.totalorder %s69, %s71
    %p78 = scmp.eq.s32.totalorder %s19, 1
    %p79 = por %p77, %p78
    %p80 = scmp.ne.s32.totalorder %s71, %s72
    %p81 = scmp.eq.s32.totalorder %s19, 0
    %p82 = por %p80, %p81
    %p83 = scmp.ne.s32.totalorder %s71, %s72
    %p84 = scmp.eq.s32.totalorder %s20, 1
    %p85 = por %p83, %p84
    %p87 = scmp.ne.s32.totalorder %s72, %s86
    %p88 = scmp.eq.s32.totalorder %s20, 0
    %p89 = por %p87, %p88
    %s91 = sadd.s32 %s90, 1
    %p94 = scmp.eq.s32.totalorder %s14, 1
    %p95 = scmp.ne.s32.totalorder %s90, %s92
    %p96 = scmp.eq.s32.totalorder %s14, 0
    %p97 = por %p95, %p96
    %p98 = scmp.ne.s32.totalorder %s90, %s92
    %p99 = scmp.eq.s32.totalorder %s19, 1
    %p100 = por %p98, %p99
    %p101 = scmp.ne.s32.totalorder %s92, %s93
    %p102 = scmp.eq.s32.totalorder %s19, 0
    %p103 = por %p101, %p102
    %p104 = scmp.ne.s32.totalorder %s92, %s93
    %p105 = scmp.eq.s32.totalorder %s20, 1
    %p106 = por %p104, %p105
    %p108 = scmp.ne.s32.totalorder %s93, %s107
    %p109 = scmp.eq.s32.totalorder %s20, 0
    %p110 = por %p108, %p109
    %s112 = sadd.s32 %s111, 1
    %p115 = scmp.eq.s32.totalorder %s14, 1
    %p116 = scmp.ne.s32.totalorder %s111, %s113
    %p117 = scmp.eq.s32.totalorder %s14, 0
    %p118 = por %p116, %p117
    %p119 = scmp.ne.s32.totalorder %s111, %s113
    %p120 = scmp.eq.s32.totalorder %s19, 1
    %p121 = por %p119, %p120
    %p122 = scmp.ne.s32.totalorder %s113, %s114
    %p123 = scmp.eq.s32.totalorder %s19, 0
    %p124 = por %p122, %p123
    %p125 = scmp.ne.s32.totalorder %s113, %s114
    %p126 = scmp.eq.s32.totalorder %s20, 1
    %p127 = por %p125, %p126
    %p129 = scmp.ne.s32.totalorder %s114, %s128
    %p130 = scmp.eq.s32.totalorder %s20, 0
    %p131 = por %p129, %p130
    %s132 = ssub.s32 %s14, %s21
    %p133 = scmp.eq.s32.totalorder %s132, 0
    %s135 = sadd.s32 %s134, 1
    %s136 = scalar_select %p133, %s134, %s135
    %p139 = pneg %p133
    %p140 = scmp.eq.s32.totalorder %s14, 1
    %p141 = por %p139, %p140
    %p142 = scmp.ne.s32.totalorder %s134, %s137
    %p143 = scmp.eq.s32.totalorder %s14, 0
    %p144 = por %p142, %p143
    %p145 = scmp.ne.s32.totalorder %s134, %s137
    %p146 = scmp.eq.s32.totalorder %s19, 1
    %p147 = por %p145, %p146
    %p148 = scmp.ne.s32.totalorder %s137, %s138
    %p149 = scmp.eq.s32.totalorder %s19, 0
    %p150 = por %p148, %p149
    %p151 = scmp.ne.s32.totalorder %s137, %s138
    %p152 = scmp.eq.s32.totalorder %s20, 1
    %p153 = por %p151, %p152
    %p155 = scmp.ne.s32.totalorder %s138, %s154
    %p156 = scmp.eq.s32.totalorder %s20, 0
    %p157 = por %p155, %p156
    %s158 = ssub.s32 %s14, %s21
    %p159 = scmp.eq.s32.totalorder %s158, 0
    %s161 = sadd.s32 %s160, 1
    %s162 = scalar_select %p159, %s160, %s161
    %p165 = pneg %p159
    %p166 = scmp.eq.s32.totalorder %s14, 1
    %p167 = por %p165, %p166
    %p168 = scmp.ne.s32.totalorder %s160, %s163
    %p169 = scmp.eq.s32.totalorder %s14, 0
    %p170 = por %p168, %p169
    %p171 = scmp.ne.s32.totalorder %s160, %s163
    %p172 = scmp.eq.s32.totalorder %s19, 1
    %p173 = por %p171, %p172
    %p174 = scmp.ne.s32.totalorder %s163, %s164
    %p175 = scmp.eq.s32.totalorder %s19, 0
    %p176 = por %p174, %p175
    %p177 = scmp.ne.s32.totalorder %s163, %s164
    %p178 = scmp.eq.s32.totalorder %s20, 1
    %p179 = por %p177, %p178
    %p181 = scmp.ne.s32.totalorder %s164, %s180
    %p182 = scmp.eq.s32.totalorder %s20, 0
    %p183 = por %p181, %p182
    %s184 = ssub.s32 %s14, %s21
    %p185 = scmp.eq.s32.totalorder %s184, 0
    %s187 = sadd.s32 %s186, 1
    %s188 = scalar_select %p185, %s186, %s187
    %p191 = pneg %p185
    %p192 = scmp.eq.s32.totalorder %s14, 1
    %p193 = por %p191, %p192
    %p194 = scmp.ne.s32.totalorder %s186, %s189
    %p195 = scmp.eq.s32.totalorder %s14, 0
    %p196 = por %p194, %p195
    %p197 = scmp.ne.s32.totalorder %s186, %s189
    %p198 = scmp.eq.s32.totalorder %s19, 1
    %p199 = por %p197, %p198
    %p200 = scmp.ne.s32.totalorder %s189, %s190
    %p201 = scmp.eq.s32.totalorder %s19, 0
    %p202 = por %p200, %p201
    %p203 = scmp.ne.s32.totalorder %s189, %s190
    %p204 = scmp.eq.s32.totalorder %s20, 1
    %p205 = por %p203, %p204
    %p207 = scmp.ne.s32.totalorder %s190, %s206
    %p208 = scmp.eq.s32.totalorder %s20, 0
    %p209 = por %p207, %p208
    %p210 = scmp.le.s32.totalorder 1, %s14
    %p211 = scmp.lt.s32.totalorder %s14, 3
    %p212 = pnand %p210, %p211
    %p213 = pneg %p212
    // Predicated region
    $region9: #{tpu_custom_call.1} parent=5 // pred_check
      _
    $region10: #{tpu_custom_call.1} parent=5 // pred_check_branch
      %215 = sbr.rel (%p212) target = $region12
    $region11: #{tpu_custom_call.1} parent=5 // pred_region
      %s216 = ssub.s32 %s14, 1
      // Predicated region
      $region13: #{tpu_custom_call.1} parent=11 // pred_check
        %p217 = pneg %p61
      $region14: #{tpu_custom_call.1} parent=11 // pred_check_branch
        %219 = sbr.rel (%p217) target = $region16
      $region15: #{tpu_custom_call.1} parent=11 // pred_region
        _
      $region16: #{tpu_custom_call.1} parent=11 // pred_fallthru
        _
      // Predicated region
      $region17: #{tpu_custom_call.1} parent=11 // pred_check
        %p220 = pneg %p82
      $region18: #{tpu_custom_call.1} parent=11 // pred_check_branch
        %222 = sbr.rel (%p220) target = $region20
      $region19: #{tpu_custom_call.1} parent=11 // pred_region
        _
      $region20: #{tpu_custom_call.1} parent=11 // pred_fallthru
        _
      // Predicated region
      $region21: #{tpu_custom_call.1} parent=11 // pred_check
        %p223 = pneg %p103
      $region22: #{tpu_custom_call.1} parent=11 // pred_check_branch
        %225 = sbr.rel (%p223) target = $region24
      $region23: #{tpu_custom_call.1} parent=11 // pred_region
        _
      $region24: #{tpu_custom_call.1} parent=11 // pred_fallthru
        _
      // Predicated region
      $region25: #{tpu_custom_call.1} parent=11 // pred_check
        %p226 = pneg %p124
      $region26: #{tpu_custom_call.1} parent=11 // pred_check_branch
        %228 = sbr.rel (%p226) target = $region28
      $region27: #{tpu_custom_call.1} parent=11 // pred_region
        _
      $region28: #{tpu_custom_call.1} parent=11 // pred_fallthru
        _
    $region12: #{tpu_custom_call.1} parent=5 // pred_fallthru
      _
    %p229 = scmp.lt.s32.totalorder %s14, 2
    // Predicated region
    $region29: #{tpu_custom_call.1} parent=5 // pred_check
      %p230 = pneg %p229
    $region30: #{tpu_custom_call.1} parent=5 // pred_check_branch
      %232 = sbr.rel (%p230) target = $region32
    $region31: #{tpu_custom_call.1} parent=5 // pred_region
      // Predicated region
      $region33: #{tpu_custom_call.1} parent=31 // pred_check
        %p233 = pneg %p34
      $region34: #{tpu_custom_call.1} parent=31 // pred_check_branch
        %235 = sbr.rel (%p233) target = $region36
      $region35: #{tpu_custom_call.1} parent=31 // pred_region
        %p236 = scmp.lt.s32.totalorder %s14, 1
        %s237 = scalar_select %p236, %s14, 1
        %s238 = smul.addr %s237, 32
        %s239 = smul.addr %s238, 8
        %s240 = scalar_lea.vmem %s0, %s239
      $region36: #{tpu_custom_call.1} parent=31 // pred_fallthru
        _
    $region32: #{tpu_custom_call.1} parent=5 // pred_fallthru
      _
    %p241 = scmp.le.s32.totalorder 1, %s14
    %p242 = scmp.lt.s32.totalorder %s14, 3
    %p243 = pnand %p241, %p242
    %p244 = pneg %p243
    // Predicated region
    $region37: #{tpu_custom_call.1} parent=5 // pred_check
      _
    $region38: #{tpu_custom_call.1} parent=5 // pred_check_branch
      %246 = sbr.rel (%p243) target = $region40
    $region39: #{tpu_custom_call.1} parent=5 // pred_region
      %s247 = ssub.s32 %s14, 1
      %p248 = scmp.lt.s32.totalorder %s19, 1
      %s249 = scalar_select %p248, %s19, 1
      %s250 = smul.addr %s249, 32
      %s251 = smul.addr %s250, 8
      %s252 = scalar_lea.vmem %s0, %s251
      %p253 = pneg %p40
      %p254 = pneg %p37
      %p255 = pneg %p61
      %p256 = pneg %p58
      %p257 = pneg %p82
      %p258 = pneg %p79
      %p259 = pneg %p103
      %p260 = pneg %p100
      %p261 = pneg %p124
      %p262 = pneg %p121
      %p263 = pneg %p150
      %p264 = pneg %p147
      %p265 = scmp.lt.s32.totalorder %s19, 1
      %s266 = scalar_select %p265, %s19, 1
      %s267 = smul.addr %s266, 32
      %s268 = smul.addr %s267, 4
      %s269 = scalar_lea.vmem %s5, %s268
      %p270 = pneg %p176
      %p271 = pneg %p173
      %p272 = scmp.lt.s32.totalorder %s19, 1
      %s273 = scalar_select %p272, %s19, 1
      %s274 = smul.addr %s273, 32
      %s275 = smul.addr %s274, 4
      %s276 = scalar_lea.vmem %s6, %s275
      %p277 = pneg %p202
      %p278 = pneg %p199
      %p279 = scmp.lt.s32.totalorder %s19, 1
      %s280 = scalar_select %p279, %s19, 1
      %s281 = smul.addr %s280, 32
      %s282 = smul.addr %s281, 4
      %s283 = scalar_lea.vmem %s7, %s282
      %p284 = scmp.lt.s32.totalorder %s19, 1
      %s285 = scalar_select %p284, %s19, 1
      %s286 = smul.addr %s285, 32
      %s287 = smul.addr %s286, 8
      %s288 = scalar_lea.vmem %s0, %s287
      %p289 = scmp.lt.s32.totalorder %s19, 1
      %s290 = scalar_select %p289, %s19, 1
      %s291 = smul.addr %s290, 32
      %s292 = smul.addr %s291, 4
      %s293 = scalar_lea.vmem %s5, %s292
      %p294 = scmp.lt.s32.totalorder %s19, 1
      %s295 = scalar_select %p294, %s19, 1
      %s296 = smul.addr %s295, 32
      %s297 = smul.addr %s296, 4
      %s298 = scalar_lea.vmem %s6, %s297
      %p299 = scmp.lt.s32.totalorder %s19, 1
      %s300 = scalar_select %p299, %s19, 1
      %s301 = smul.addr %s300, 32
      %s302 = smul.addr %s301, 4
      %s303 = scalar_lea.vmem %s7, %s302
      %v305 = vld [vmem:[%s288] sm:$0xff]
      %v306 = vld [vmem:[%s288 + $0x8] sm:$0xff]
      %v307 = vld [vmem:[%s288 + $0x10] sm:$0xff]
      %v308 = vld [vmem:[%s288 + $0x18] sm:$0xff]
      %v309 = vld [vmem:[%s288 + $0x20] sm:$0xff]
      %v310 = vld [vmem:[%s288 + $0x28] sm:$0xff]
      %v311 = vld [vmem:[%s288 + $0x30] sm:$0xff]
      %v312 = vld [vmem:[%s288 + $0x38] sm:$0xff]
      %v313 = vld [vmem:[%s288 + $0x40] sm:$0xff]
      %v314 = vld [vmem:[%s288 + $0x48] sm:$0xff]
      %v315 = vld [vmem:[%s288 + $0x50] sm:$0xff]
      %v316 = vld [vmem:[%s288 + $0x58] sm:$0xff]
      %v317 = vld [vmem:[%s288 + $0x60] sm:$0xff]
      %v318 = vld [vmem:[%s288 + $0x68] sm:$0xff]
      %v319 = vld [vmem:[%s288 + $0x70] sm:$0xff]
      %v320 = vld [vmem:[%s288 + $0x78] sm:$0xff]
      %v321 = vld [vmem:[%s288 + $0x80] sm:$0xff]
      %v322 = vld [vmem:[%s288 + $0x88] sm:$0xff]
      %v323 = vld [vmem:[%s288 + $0x90] sm:$0xff]
      %v324 = vld [vmem:[%s288 + $0x98] sm:$0xff]
      %v325 = vld [vmem:[%s288 + $0xa0] sm:$0xff]
      %v326 = vld [vmem:[%s288 + $0xa8] sm:$0xff]
      %v327 = vld [vmem:[%s288 + $0xb0] sm:$0xff]
      %v328 = vld [vmem:[%s288 + $0xb8] sm:$0xff]
      %v329 = vld [vmem:[%s288 + $0xc0] sm:$0xff]
      %v330 = vld [vmem:[%s288 + $0xc8] sm:$0xff]
      %v331 = vld [vmem:[%s288 + $0xd0] sm:$0xff]
      %v332 = vld [vmem:[%s288 + $0xd8] sm:$0xff]
      %v333 = vld [vmem:[%s288 + $0xe0] sm:$0xff]
      %v334 = vld [vmem:[%s288 + $0xe8] sm:$0xff]
      %v335 = vld [vmem:[%s288 + $0xf0] sm:$0xff]
      %v336 = vld [vmem:[%s288 + $0xf8] sm:$0xff]
      %vm337 = vcmask 31744
      %v338 = vsel %vm337, %v305, 0.0
      %v339 = vsel %vm337, %v306, 0.0
      %v340 = vadd.f32 %v338, %v339
      %v341 = vsel %vm337, %v307, 0.0
      %v342 = vadd.f32 %v340, %v341
      %v343 = vsel %vm337, %v308, 0.0
      %v344 = vadd.f32 %v342, %v343
      %v345 = vsel %vm337, %v309, 0.0
      %v346 = vadd.f32 %v344, %v345
      %v347 = vsel %vm337, %v310, 0.0
      %v348 = vadd.f32 %v346, %v347
      %v349 = vsel %vm337, %v311, 0.0
      %v350 = vadd.f32 %v348, %v349
      %v351 = vsel %vm337, %v312, 0.0
      %v352 = vadd.f32 %v350, %v351
      %v353 = vsel %vm337, %v313, 0.0
      %v354 = vadd.f32 %v352, %v353
      %v355 = vsel %vm337, %v314, 0.0
      %v356 = vadd.f32 %v354, %v355
      %v357 = vsel %vm337, %v315, 0.0
      %v358 = vadd.f32 %v356, %v357
      %v359 = vsel %vm337, %v316, 0.0
      %v360 = vadd.f32 %v358, %v359
      %v361 = vsel %vm337, %v317, 0.0
      %v362 = vadd.f32 %v360, %v361
      %v363 = vsel %vm337, %v318, 0.0
      %v364 = vadd.f32 %v362, %v363
      %v365 = vsel %vm337, %v319, 0.0
      %v366 = vadd.f32 %v364, %v365
      %v367 = vsel %vm337, %v320, 0.0
      %v368 = vadd.f32 %v366, %v367
      %v369 = vsel %vm337, %v321, 0.0
      %v370 = vadd.f32 %v368, %v369
      %v371 = vsel %vm337, %v322, 0.0
      %v372 = vadd.f32 %v370, %v371
      %v373 = vsel %vm337, %v323, 0.0
      %v374 = vadd.f32 %v372, %v373
      %v375 = vsel %vm337, %v324, 0.0
      %v376 = vadd.f32 %v374, %v375
      %v377 = vsel %vm337, %v325, 0.0
      %v378 = vadd.f32 %v376, %v377
      %v379 = vsel %vm337, %v326, 0.0
      %v380 = vadd.f32 %v378, %v379
      %v381 = vsel %vm337, %v327, 0.0
      %v382 = vadd.f32 %v380, %v381
      %v383 = vsel %vm337, %v328, 0.0
      %v384 = vadd.f32 %v382, %v383
      %v385 = vsel %vm337, %v329, 0.0
      %v386 = vadd.f32 %v384, %v385
      %v387 = vsel %vm337, %v330, 0.0
      %v388 = vadd.f32 %v386, %v387
      %v389 = vsel %vm337, %v331, 0.0
      %v390 = vadd.f32 %v388, %v389
      %v391 = vsel %vm337, %v332, 0.0
      %v392 = vadd.f32 %v390, %v391
      %v393 = vsel %vm337, %v333, 0.0
      %v394 = vadd.f32 %v392, %v393
      %v395 = vsel %vm337, %v334, 0.0
      %v396 = vadd.f32 %v394, %v395
      %v397 = vsel %vm337, %v335, 0.0
      %v398 = vadd.f32 %v396, %v397
      %v399 = vsel %vm337, %v336, 0.0
      %v400 = vadd.f32 %v398, %v399
      %v401 = vrot.slane %v400, 4
      %v402 = vadd.f32 %v400, %v401
      %v403 = vrot.slane %v402, 2
      %v404 = vadd.f32 %v402, %v403
      %v405 = vrot.slane %v404, 1
      %v406 = vadd.f32 %v404, %v405
      %v407 = vmul.f32 %v406, 0.00390625
      %v408 = vsub.f32 %v305, %v407
      %v409 = vsub.f32 %v306, %v407
      %v410 = vsub.f32 %v307, %v407
      %v411 = vsub.f32 %v308, %v407
      %v412 = vsub.f32 %v309, %v407
      %v413 = vsub.f32 %v310, %v407
      %v414 = vsub.f32 %v311, %v407
      %v415 = vsub.f32 %v312, %v407
      %v416 = vsub.f32 %v313, %v407
      %v417 = vsub.f32 %v314, %v407
      %v418 = vsub.f32 %v315, %v407
      %v419 = vsub.f32 %v316, %v407
      %v420 = vsub.f32 %v317, %v407
      %v421 = vsub.f32 %v318, %v407
      %v422 = vsub.f32 %v319, %v407
      %v423 = vsub.f32 %v320, %v407
      %v424 = vsub.f32 %v321, %v407
      %v425 = vsub.f32 %v322, %v407
      %v426 = vsub.f32 %v323, %v407
      %v427 = vsub.f32 %v324, %v407
      %v428 = vsub.f32 %v325, %v407
      %v429 = vsub.f32 %v326, %v407
      %v430 = vsub.f32 %v327, %v407
      %v431 = vsub.f32 %v328, %v407
      %v432 = vsub.f32 %v329, %v407
      %v433 = vsub.f32 %v330, %v407
      %v434 = vsub.f32 %v331, %v407
      %v435 = vsub.f32 %v332, %v407
      %v436 = vsub.f32 %v333, %v407
      %v437 = vsub.f32 %v334, %v407
      %v438 = vsub.f32 %v335, %v407
      %v439 = vsub.f32 %v336, %v407
      %v440 = vmul.f32 %v408, %v408
      %v441 = vmul.f32 %v409, %v409
      %v442 = vmul.f32 %v410, %v410
      %v443 = vmul.f32 %v411, %v411
      %v444 = vmul.f32 %v412, %v412
      %v445 = vmul.f32 %v413, %v413
      %v446 = vmul.f32 %v414, %v414
      %v447 = vmul.f32 %v415, %v415
      %v448 = vmul.f32 %v416, %v416
      %v449 = vmul.f32 %v417, %v417
      %v450 = vmul.f32 %v418, %v418
      %v451 = vmul.f32 %v419, %v419
      %v452 = vmul.f32 %v420, %v420
      %v453 = vmul.f32 %v421, %v421
      %v454 = vmul.f32 %v422, %v422
      %v455 = vmul.f32 %v423, %v423
      %v456 = vmul.f32 %v424, %v424
      %v457 = vmul.f32 %v425, %v425
      %v458 = vmul.f32 %v426, %v426
      %v459 = vmul.f32 %v427, %v427
      %v460 = vmul.f32 %v428, %v428
      %v461 = vmul.f32 %v429, %v429
      %v462 = vmul.f32 %v430, %v430
      %v463 = vmul.f32 %v431, %v431
      %v464 = vmul.f32 %v432, %v432
      %v465 = vmul.f32 %v433, %v433
      %v466 = vmul.f32 %v434, %v434
      %v467 = vmul.f32 %v435, %v435
      %v468 = vmul.f32 %v436, %v436
      %v469 = vmul.f32 %v437, %v437
      %v470 = vmul.f32 %v438, %v438
      %v471 = vmul.f32 %v439, %v439
      %v472 = vsel %vm337, %v440, 0.0
      %v473 = vsel %vm337, %v441, 0.0
      %v474 = vadd.f32 %v472, %v473
      %v475 = vsel %vm337, %v442, 0.0
      %v476 = vadd.f32 %v474, %v475
      %v477 = vsel %vm337, %v443, 0.0
      %v478 = vadd.f32 %v476, %v477
      %v479 = vsel %vm337, %v444, 0.0
      %v480 = vadd.f32 %v478, %v479
      %v481 = vsel %vm337, %v445, 0.0
      %v482 = vadd.f32 %v480, %v481
      %v483 = vsel %vm337, %v446, 0.0
      %v484 = vadd.f32 %v482, %v483
      %v485 = vsel %vm337, %v447, 0.0
      %v486 = vadd.f32 %v484, %v485
      %v487 = vsel %vm337, %v448, 0.0
      %v488 = vadd.f32 %v486, %v487
      %v489 = vsel %vm337, %v449, 0.0
      %v490 = vadd.f32 %v488, %v489
      %v491 = vsel %vm337, %v450, 0.0
      %v492 = vadd.f32 %v490, %v491
      %v493 = vsel %vm337, %v451, 0.0
      %v494 = vadd.f32 %v492, %v493
      %v495 = vsel %vm337, %v452, 0.0
      %v496 = vadd.f32 %v494, %v495
      %v497 = vsel %vm337, %v453, 0.0
      %v498 = vadd.f32 %v496, %v497
      %v499 = vsel %vm337, %v454, 0.0
      %v500 = vadd.f32 %v498, %v499
      %v501 = vsel %vm337, %v455, 0.0
      %v502 = vadd.f32 %v500, %v501
      %v503 = vsel %vm337, %v456, 0.0
      %v504 = vadd.f32 %v502, %v503
      %v505 = vsel %vm337, %v457, 0.0
      %v506 = vadd.f32 %v504, %v505
      %v507 = vsel %vm337, %v458, 0.0
      %v508 = vadd.f32 %v506, %v507
      %v509 = vsel %vm337, %v459, 0.0
      %v510 = vadd.f32 %v508, %v509
      %v511 = vsel %vm337, %v460, 0.0
      %v512 = vadd.f32 %v510, %v511
      %v513 = vsel %vm337, %v461, 0.0
      %v514 = vadd.f32 %v512, %v513
      %v515 = vsel %vm337, %v462, 0.0
      %v516 = vadd.f32 %v514, %v515
      %v517 = vsel %vm337, %v463, 0.0
      %v518 = vadd.f32 %v516, %v517
      %v519 = vsel %vm337, %v464, 0.0
      %v520 = vadd.f32 %v518, %v519
      %v521 = vsel %vm337, %v465, 0.0
      %v522 = vadd.f32 %v520, %v521
      %v523 = vsel %vm337, %v466, 0.0
      %v524 = vadd.f32 %v522, %v523
      %v525 = vsel %vm337, %v467, 0.0
      %v526 = vadd.f32 %v524, %v525
      %v527 = vsel %vm337, %v468, 0.0
      %v528 = vadd.f32 %v526, %v527
      %v529 = vsel %vm337, %v469, 0.0
      %v530 = vadd.f32 %v528, %v529
      %v531 = vsel %vm337, %v470, 0.0
      %v532 = vadd.f32 %v530, %v531
      %v533 = vsel %vm337, %v471, 0.0
      %v534 = vadd.f32 %v532, %v533
      %v535 = vrot.slane %v534, 4
      %v536 = vadd.f32 %v534, %v535
      %v537 = vrot.slane %v536, 2
      %v538 = vadd.f32 %v536, %v537
      %v539 = vrot.slane %v538, 1
      %v540 = vadd.f32 %v538, %v539
      %v541 = vmul.f32 %v540, 0.00390625
      %v542 = vadd.f32 %v541, 1e-06
      %v543 = vrsqrt.pop %v542
      %v544 = vld [vmem:[%s1] sm:$0x1]
      %v545 = vmul.f32 %v544, %v543
      %v547 = vlaneseq
      %v548 = vshrl.u32 %v547, 7
      %v549 = vsub.s32 0, %v548
      %v550 = vrot.slane %v545, %v549
      %v552 = vmul.f32 %v408, %v550
      %v553 = vmul.f32 %v409, %v550
      %v554 = vmul.f32 %v410, %v550
      %v555 = vmul.f32 %v411, %v550
      %v556 = vmul.f32 %v412, %v550
      %v557 = vmul.f32 %v413, %v550
      %v558 = vmul.f32 %v414, %v550
      %v559 = vmul.f32 %v415, %v550
      %v560 = vmul.f32 %v416, %v550
      %v561 = vmul.f32 %v417, %v550
      %v562 = vmul.f32 %v418, %v550
      %v563 = vmul.f32 %v419, %v550
      %v564 = vmul.f32 %v420, %v550
      %v565 = vmul.f32 %v421, %v550
      %v566 = vmul.f32 %v422, %v550
      %v567 = vmul.f32 %v423, %v550
      %v568 = vmul.f32 %v424, %v550
      %v569 = vmul.f32 %v425, %v550
      %v570 = vmul.f32 %v426, %v550
      %v571 = vmul.f32 %v427, %v550
      %v572 = vmul.f32 %v428, %v550
      %v573 = vmul.f32 %v429, %v550
      %v574 = vmul.f32 %v430, %v550
      %v575 = vmul.f32 %v431, %v550
      %v576 = vmul.f32 %v432, %v550
      %v577 = vmul.f32 %v433, %v550
      %v578 = vmul.f32 %v434, %v550
      %v579 = vmul.f32 %v435, %v550
      %v580 = vmul.f32 %v436, %v550
      %v581 = vmul.f32 %v437, %v550
      %v582 = vmul.f32 %v438, %v550
      %v583 = vmul.f32 %v439, %v550
      %v584 = vld [vmem:[%s2] sm:$0x1]
      %v586 = vlaneseq
      %v587 = vshrl.u32 %v586, 7
      %v588 = vsub.s32 0, %v587
      %v589 = vrot.slane %v584, %v588
      %v591 = vadd.f32 %v552, %v589
      %v592 = vadd.f32 %v553, %v589
      %v593 = vadd.f32 %v554, %v589
      %v594 = vadd.f32 %v555, %v589
      %v595 = vadd.f32 %v556, %v589
      %v596 = vadd.f32 %v557, %v589
      %v597 = vadd.f32 %v558, %v589
      %v598 = vadd.f32 %v559, %v589
      %v599 = vadd.f32 %v560, %v589
      %v600 = vadd.f32 %v561, %v589
      %v601 = vadd.f32 %v562, %v589
      %v602 = vadd.f32 %v563, %v589
      %v603 = vadd.f32 %v564, %v589
      %v604 = vadd.f32 %v565, %v589
      %v605 = vadd.f32 %v566, %v589
      %v606 = vadd.f32 %v567, %v589
      %v607 = vadd.f32 %v568, %v589
      %v608 = vadd.f32 %v569, %v589
      %v609 = vadd.f32 %v570, %v589
      %v610 = vadd.f32 %v571, %v589
      %v611 = vadd.f32 %v572, %v589
      %v612 = vadd.f32 %v573, %v589
      %v613 = vadd.f32 %v574, %v589
      %v614 = vadd.f32 %v575, %v589
      %v615 = vadd.f32 %v576, %v589
      %v616 = vadd.f32 %v577, %v589
      %v617 = vadd.f32 %v578, %v589
      %v618 = vadd.f32 %v579, %v589
      %v619 = vadd.f32 %v580, %v589
      %v620 = vadd.f32 %v581, %v589
      %v621 = vadd.f32 %v582, %v589
      %v622 = vadd.f32 %v583, %v589
      %v623 = vpack.c.bf16 %v592, %v591
      %v624 = vpack.c.bf16 %v594, %v593
      %v625 = vpack.c.bf16 %v596, %v595
      %v626 = vpack.c.bf16 %v598, %v597
      %v627 = vpack.c.bf16 %v600, %v599
      %v628 = vpack.c.bf16 %v602, %v601
      %v629 = vpack.c.bf16 %v604, %v603
      %v630 = vpack.c.bf16 %v606, %v605
      %v631 = vpack.c.bf16 %v608, %v607
      %v632 = vpack.c.bf16 %v610, %v609
      %v633 = vpack.c.bf16 %v612, %v611
      %v634 = vpack.c.bf16 %v614, %v613
      %v635 = vpack.c.bf16 %v616, %v615
      %v636 = vpack.c.bf16 %v618, %v617
      %v637 = vpack.c.bf16 %v620, %v619
      %v638 = vpack.c.bf16 %v622, %v621
      %v639 = vld [vmem:[%s3] sm:$0x3]
      %v640 = vld [vmem:[%s4] sm:$0x1]
      %v642 = vlaneseq
      %v643 = vshrl.u32 %v642, 7
      %v644 = vsub.s32 0, %v643
      %v645 = vrot.slane %v640, %v644
      %v648 = vsel %vm337, %v623, 0
      %v651 = vsel %vm337, %v624, 0
      %v654 = vsel %vm337, %v625, 0
      %v657 = vsel %vm337, %v626, 0
      %v660 = vsel %vm337, %v627, 0
      %v663 = vsel %vm337, %v628, 0
      %v666 = vsel %vm337, %v629, 0
      %v669 = vsel %vm337, %v630, 0
      %v672 = vsel %vm337, %v631, 0
      %v675 = vsel %vm337, %v632, 0
      %v678 = vsel %vm337, %v633, 0
      %v681 = vsel %vm337, %v634, 0
      %v684 = vsel %vm337, %v635, 0
      %v687 = vsel %vm337, %v636, 0
      %v690 = vsel %vm337, %v637, 0
      %v693 = vsel %vm337, %v638, 0
      %vm695 = vcmask 1041408
      %v697 = vsel %vm695, %v639, 0
      %699 = vmatprep.subr.bf16.mxu0 0
      %700 = vmatpush1.bf16.msra.mxu0 0
      %701 = vmatprep.subr.bf16.mxu0 0
      %702 = vmatpush1.bf16.msra.mxu0 0
      %703 = vmatprep.subr.bf16.mxu0 0
      %704 = vmatpush1.bf16.msra.mxu0 0
      %705 = vmatprep.subr.bf16.mxu0 0
      %706 = vmatpush1.bf16.msra.mxu0 0
      %707 = vmatprep.subr.bf16.mxu0 0
      %708 = vmatpush1.bf16.msra.mxu0 0
      %709 = vmatprep.subr.bf16.mxu0 0
      %710 = vmatpush1.bf16.msra.mxu0 0
      %711 = vmatprep.subr.bf16.mxu0 0
      %712 = vmatpush1.bf16.msra.mxu0 0
      %713 = vmatprep.subr.bf16.mxu0 0
      %714 = vmatpush1.bf16.msra.mxu0 %v697
      %715 = vmatprep.subr.bf16.mxu0 0
      %716 = vmatpush2.bf16.msra.mxu0 0
      %717 = vmatprep.subr.bf16.mxu0 0
      %718 = vmatpush2.bf16.msra.mxu0 0
      %719 = vmatprep.subr.bf16.mxu0 0
      %720 = vmatpush2.bf16.msra.mxu0 0
      %721 = vmatprep.subr.bf16.mxu0 0
      %722 = vmatpush2.bf16.msra.mxu0 0
      %723 = vmatprep.subr.bf16.mxu0 0
      %724 = vmatpush2.bf16.msra.mxu0 0
      %725 = vmatprep.subr.bf16.mxu0 0
      %726 = vmatpush2.bf16.msra.mxu0 0
      %727 = vmatprep.subr.bf16.mxu0 0
      %728 = vmatpush2.bf16.msra.mxu0 0
      %729 = vmatprep.subr.bf16.mxu0 0
      %730 = vmatpush2.bf16.msra.mxu0 0
      %731 = vmatprep.mubr.bf16.mxu0 0
      %732 = vmatmul.mubr.bf16.gmra.mxu0 %v648
      %v733 = vpop.f32.mrf.mxu0
      %v734 = vadd.f32 %v645, %v733
      %v735 = vpop.f32.mrf.mxu0
      %v736 = vpop.f32.mrf.mxu0
      %v737 = vadd.f32 %v645, %v736
      %v738 = vpop.f32.mrf.mxu0
      %739 = vmatprep.mubr.bf16.mxu0 0
      %740 = vmatmul.mubr.bf16.gmra.mxu0 %v651
      %v741 = vpop.f32.mrf.mxu0
      %v742 = vadd.f32 %v645, %v741
      %v743 = vpop.f32.mrf.mxu0
      %v744 = vpop.f32.mrf.mxu0
      %v745 = vadd.f32 %v645, %v744
      %v746 = vpop.f32.mrf.mxu0
      %747 = vmatprep.mubr.bf16.mxu0 0
      %748 = vmatmul.mubr.bf16.gmra.mxu0 %v654
      %v749 = vpop.f32.mrf.mxu0
      %v750 = vadd.f32 %v645, %v749
      %v751 = vpop.f32.mrf.mxu0
      %v752 = vpop.f32.mrf.mxu0
      %v753 = vadd.f32 %v645, %v752
      %v754 = vpop.f32.mrf.mxu0
      %755 = vmatprep.mubr.bf16.mxu0 0
      %756 = vmatmul.mubr.bf16.gmra.mxu0 %v657
      %v757 = vpop.f32.mrf.mxu0
      %v758 = vadd.f32 %v645, %v757
      %v759 = vpop.f32.mrf.mxu0
      %v760 = vpop.f32.mrf.mxu0
      %v761 = vadd.f32 %v645, %v760
      %v762 = vpop.f32.mrf.mxu0
      %763 = vmatprep.mubr.bf16.mxu0 0
      %764 = vmatmul.mubr.bf16.gmra.mxu0 %v660
      %v765 = vpop.f32.mrf.mxu0
      %v766 = vadd.f32 %v645, %v765
      %v767 = vpop.f32.mrf.mxu0
      %v768 = vpop.f32.mrf.mxu0
      %v769 = vadd.f32 %v645, %v768
      %v770 = vpop.f32.mrf.mxu0
      %771 = vmatprep.mubr.bf16.mxu0 0
      %772 = vmatmul.mubr.bf16.gmra.mxu0 %v663
      %v773 = vpop.f32.mrf.mxu0
      %v774 = vadd.f32 %v645, %v773
      %v775 = vpop.f32.mrf.mxu0
      %v776 = vpop.f32.mrf.mxu0
      %v777 = vadd.f32 %v645, %v776
      %v778 = vpop.f32.mrf.mxu0
      %779 = vmatprep.mubr.bf16.mxu0 0
      %780 = vmatmul.mubr.bf16.gmra.mxu0 %v666
      %v781 = vpop.f32.mrf.mxu0
      %v782 = vadd.f32 %v645, %v781
      %v783 = vpop.f32.mrf.mxu0
      %v784 = vpop.f32.mrf.mxu0
      %v785 = vadd.f32 %v645, %v784
      %v786 = vpop.f32.mrf.mxu0
      %787 = vmatprep.mubr.bf16.mxu0 0
      %788 = vmatmul.mubr.bf16.gmra.mxu0 %v669
      %v789 = vpop.f32.mrf.mxu0
      %v790 = vadd.f32 %v645, %v789
      %v791 = vpop.f32.mrf.mxu0
      %v792 = vpop.f32.mrf.mxu0
      %v793 = vadd.f32 %v645, %v792
      %v794 = vpop.f32.mrf.mxu0
      %795 = vmatprep.mubr.bf16.mxu0 0
      %796 = vmatmul.mubr.bf16.gmra.mxu0 %v672
      %v797 = vpop.f32.mrf.mxu0
      %v798 = vadd.f32 %v645, %v797
      %v799 = vpop.f32.mrf.mxu0
      %v800 = vpop.f32.mrf.mxu0
      %v801 = vadd.f32 %v645, %v800
      %v802 = vpop.f32.mrf.mxu0
      %803 = vmatprep.mubr.bf16.mxu0 0
      %804 = vmatmul.mubr.bf16.gmra.mxu0 %v675
      %v805 = vpop.f32.mrf.mxu0
      %v806 = vadd.f32 %v645, %v805
      %v807 = vpop.f32.mrf.mxu0
      %v808 = vpop.f32.mrf.mxu0
      %v809 = vadd.f32 %v645, %v808
      %v810 = vpop.f32.mrf.mxu0
      %811 = vmatprep.mubr.bf16.mxu0 0
      %812 = vmatmul.mubr.bf16.gmra.mxu0 %v678
      %v813 = vpop.f32.mrf.mxu0
      %v814 = vadd.f32 %v645, %v813
      %v815 = vpop.f32.mrf.mxu0
      %v816 = vpop.f32.mrf.mxu0
      %v817 = vadd.f32 %v645, %v816
      %v818 = vpop.f32.mrf.mxu0
      %819 = vmatprep.mubr.bf16.mxu0 0
      %820 = vmatmul.mubr.bf16.gmra.mxu0 %v681
      %v821 = vpop.f32.mrf.mxu0
      %v822 = vadd.f32 %v645, %v821
      %v823 = vpop.f32.mrf.mxu0
      %v824 = vpop.f32.mrf.mxu0
      %v825 = vadd.f32 %v645, %v824
      %v826 = vpop.f32.mrf.mxu0
      %827 = vmatprep.mubr.bf16.mxu0 0
      %828 = vmatmul.mubr.bf16.gmra.mxu0 %v684
      %v829 = vpop.f32.mrf.mxu0
      %v830 = vadd.f32 %v645, %v829
      %v831 = vpop.f32.mrf.mxu0
      %v832 = vpop.f32.mrf.mxu0
      %v833 = vadd.f32 %v645, %v832
      %v834 = vpop.f32.mrf.mxu0
      %835 = vmatprep.mubr.bf16.mxu0 0
      %836 = vmatmul.mubr.bf16.gmra.mxu0 %v687
      %v837 = vpop.f32.mrf.mxu0
      %v838 = vadd.f32 %v645, %v837
      %v839 = vpop.f32.mrf.mxu0
      %v840 = vpop.f32.mrf.mxu0
      %v841 = vadd.f32 %v645, %v840
      %v842 = vpop.f32.mrf.mxu0
      %843 = vmatprep.mubr.bf16.mxu0 0
      %844 = vmatmul.mubr.bf16.gmra.mxu0 %v690
      %v845 = vpop.f32.mrf.mxu0
      %v846 = vadd.f32 %v645, %v845
      %v847 = vpop.f32.mrf.mxu0
      %v848 = vpop.f32.mrf.mxu0
      %v849 = vadd.f32 %v645, %v848
      %v850 = vpop.f32.mrf.mxu0
      %851 = vmatprep.mubr.bf16.mxu0 0
      %852 = vmatmul.mubr.bf16.gmra.mxu0 %v693
      %v853 = vpop.f32.mrf.mxu0
      %v854 = vadd.f32 %v645, %v853
      %v855 = vpop.f32.mrf.mxu0
      %v856 = vpop.f32.mrf.mxu0
      %v857 = vadd.f32 %v645, %v856
      %v858 = vpop.f32.mrf.mxu0
      %859 = vdwg.mxu0
      %v860 = vpack.c.bf16 %v737, %v734
      %v861 = vpack.c.bf16 %v745, %v742
      %v862 = vpack.c.bf16 %v753, %v750
      %v863 = vpack.c.bf16 %v761, %v758
      %v864 = vpack.c.bf16 %v769, %v766
      %v865 = vpack.c.bf16 %v777, %v774
      %v866 = vpack.c.bf16 %v785, %v782
      %v867 = vpack.c.bf16 %v793, %v790
      %v868 = vpack.c.bf16 %v801, %v798
      %v869 = vpack.c.bf16 %v809, %v806
      %v870 = vpack.c.bf16 %v817, %v814
      %v871 = vpack.c.bf16 %v825, %v822
      %v872 = vpack.c.bf16 %v833, %v830
      %v873 = vpack.c.bf16 %v841, %v838
      %v874 = vpack.c.bf16 %v849, %v846
      %v875 = vpack.c.bf16 %v857, %v854
      %v892 = vunpack.c.l.b16 %v860
      %v893 = vunpack.c.h.b16 %v860
      %v894 = vunpack.c.l.b16 %v861
      %v895 = vunpack.c.h.b16 %v861
      %v896 = vunpack.c.l.b16 %v862
      %v897 = vunpack.c.h.b16 %v862
      %v898 = vunpack.c.l.b16 %v863
      %v899 = vunpack.c.h.b16 %v863
      %v900 = vunpack.c.l.b16 %v864
      %v901 = vunpack.c.h.b16 %v864
      %v902 = vunpack.c.l.b16 %v865
      %v903 = vunpack.c.h.b16 %v865
      %v904 = vunpack.c.l.b16 %v866
      %v905 = vunpack.c.h.b16 %v866
      %v906 = vunpack.c.l.b16 %v867
      %v907 = vunpack.c.h.b16 %v867
      %v908 = vunpack.c.l.b16 %v868
      %v909 = vunpack.c.h.b16 %v868
      %v910 = vunpack.c.l.b16 %v869
      %v911 = vunpack.c.h.b16 %v869
      %v912 = vunpack.c.l.b16 %v870
      %v913 = vunpack.c.h.b16 %v870
      %v914 = vunpack.c.l.b16 %v871
      %v915 = vunpack.c.h.b16 %v871
      %v916 = vunpack.c.l.b16 %v872
      %v917 = vunpack.c.h.b16 %v872
      %v918 = vunpack.c.l.b16 %v873
      %v919 = vunpack.c.h.b16 %v873
      %v920 = vunpack.c.l.b16 %v874
      %v921 = vunpack.c.h.b16 %v874
      %v922 = vunpack.c.l.b16 %v875
      %v923 = vunpack.c.h.b16 %v875
      %v924 = vpack.c.b16 %v892, %v892
      %v925 = vpack.c.b16 %v893, %v893
      %v926 = vpack.c.b16 %v894, %v894
      %v927 = vpack.c.b16 %v895, %v895
      %v928 = vpack.c.b16 %v896, %v896
      %v929 = vpack.c.b16 %v897, %v897
      %v930 = vpack.c.b16 %v898, %v898
      %v931 = vpack.c.b16 %v899, %v899
      %v932 = vpack.c.b16 %v900, %v900
      %v933 = vpack.c.b16 %v901, %v901
      %v934 = vpack.c.b16 %v902, %v902
      %v935 = vpack.c.b16 %v903, %v903
      %v936 = vpack.c.b16 %v904, %v904
      %v937 = vpack.c.b16 %v905, %v905
      %v938 = vpack.c.b16 %v906, %v906
      %v939 = vpack.c.b16 %v907, %v907
      %v940 = vpack.c.b16 %v908, %v908
      %v941 = vpack.c.b16 %v909, %v909
      %v942 = vpack.c.b16 %v910, %v910
      %v943 = vpack.c.b16 %v911, %v911
      %v944 = vpack.c.b16 %v912, %v912
      %v945 = vpack.c.b16 %v913, %v913
      %v946 = vpack.c.b16 %v914, %v914
      %v947 = vpack.c.b16 %v915, %v915
      %v948 = vpack.c.b16 %v916, %v916
      %v949 = vpack.c.b16 %v917, %v917
      %v950 = vpack.c.b16 %v918, %v918
      %v951 = vpack.c.b16 %v919, %v919
      %v952 = vpack.c.b16 %v920, %v920
      %v953 = vpack.c.b16 %v921, %v921
      %v954 = vpack.c.b16 %v922, %v922
      %v955 = vpack.c.b16 %v923, %v923
      %vm988 = vcmask 27648
      %989 = vst.msk [vmem:[%s293] sm:$0xf] %vm988, %v924
      %990 = vst.msk [vmem:[%s293 + $0x4] sm:$0xf] %vm988, %v925
      %991 = vst.msk [vmem:[%s293 + $0x8] sm:$0xf] %vm988, %v926
      %992 = vst.msk [vmem:[%s293 + $0xc] sm:$0xf] %vm988, %v927
      %993 = vst.msk [vmem:[%s293 + $0x10] sm:$0xf] %vm988, %v928
      %994 = vst.msk [vmem:[%s293 + $0x14] sm:$0xf] %vm988, %v929
      %995 = vst.msk [vmem:[%s293 + $0x18] sm:$0xf] %vm988, %v930
      %996 = vst.msk [vmem:[%s293 + $0x1c] sm:$0xf] %vm988, %v931
      %997 = vst.msk [vmem:[%s293 + $0x20] sm:$0xf] %vm988, %v932
      %998 = vst.msk [vmem:[%s293 + $0x24] sm:$0xf] %vm988, %v933
      %999 = vst.msk [vmem:[%s293 + $0x28] sm:$0xf] %vm988, %v934
      %1000 = vst.msk [vmem:[%s293 + $0x2c] sm:$0xf] %vm988, %v935
      %1001 = vst.msk [vmem:[%s293 + $0x30] sm:$0xf] %vm988, %v936
      %1002 = vst.msk [vmem:[%s293 + $0x34] sm:$0xf] %vm988, %v937
      %1003 = vst.msk [vmem:[%s293 + $0x38] sm:$0xf] %vm988, %v938
      %1004 = vst.msk [vmem:[%s293 + $0x3c] sm:$0xf] %vm988, %v939
      %1005 = vst.msk [vmem:[%s293 + $0x40] sm:$0xf] %vm988, %v940
      %1006 = vst.msk [vmem:[%s293 + $0x44] sm:$0xf] %vm988, %v941
      %1007 = vst.msk [vmem:[%s293 + $0x48] sm:$0xf] %vm988, %v942
      %1008 = vst.msk [vmem:[%s293 + $0x4c] sm:$0xf] %vm988, %v943
      %1009 = vst.msk [vmem:[%s293 + $0x50] sm:$0xf] %vm988, %v944
      %1010 = vst.msk [vmem:[%s293 + $0x54] sm:$0xf] %vm988, %v945
      %1011 = vst.msk [vmem:[%s293 + $0x58] sm:$0xf] %vm988, %v946
      %1012 = vst.msk [vmem:[%s293 + $0x5c] sm:$0xf] %vm988, %v947
      %1013 = vst.msk [vmem:[%s293 + $0x60] sm:$0xf] %vm988, %v948
      %1014 = vst.msk [vmem:[%s293 + $0x64] sm:$0xf] %vm988, %v949
      %1015 = vst.msk [vmem:[%s293 + $0x68] sm:$0xf] %vm988, %v950
      %1016 = vst.msk [vmem:[%s293 + $0x6c] sm:$0xf] %vm988, %v951
      %1017 = vst.msk [vmem:[%s293 + $0x70] sm:$0xf] %vm988, %v952
      %1018 = vst.msk [vmem:[%s293 + $0x74] sm:$0xf] %vm988, %v953
      %1019 = vst.msk [vmem:[%s293 + $0x78] sm:$0xf] %vm988, %v954
      %1020 = vst.msk [vmem:[%s293 + $0x7c] sm:$0xf] %vm988, %v955
      %1021 = vrot.lane.b32.xlu0 %v924, 124
      %v1022 = vpop.permute.xlu0 %1021
      %1023 = vrot.lane.b32.xlu0 %v925, 124
      %v1024 = vpop.permute.xlu0 %1023
      %1025 = vrot.lane.b32.xlu0 %v926, 124
      %v1026 = vpop.permute.xlu0 %1025
      %1027 = vrot.lane.b32.xlu0 %v927, 124
      %v1028 = vpop.permute.xlu0 %1027
      %1029 = vrot.lane.b32.xlu0 %v928, 124
      %v1030 = vpop.permute.xlu0 %1029
      %1031 = vrot.lane.b32.xlu0 %v929, 124
      %v1032 = vpop.permute.xlu0 %1031
      %1033 = vrot.lane.b32.xlu0 %v930, 124
      %v1034 = vpop.permute.xlu0 %1033
      %1035 = vrot.lane.b32.xlu0 %v931, 124
      %v1036 = vpop.permute.xlu0 %1035
      %1037 = vrot.lane.b32.xlu0 %v932, 124
      %v1038 = vpop.permute.xlu0 %1037
      %1039 = vrot.lane.b32.xlu0 %v933, 124
      %v1040 = vpop.permute.xlu0 %1039
      %1041 = vrot.lane.b32.xlu0 %v934, 124
      %v1042 = vpop.permute.xlu0 %1041
      %1043 = vrot.lane.b32.xlu0 %v935, 124
      %v1044 = vpop.permute.xlu0 %1043
      %1045 = vrot.lane.b32.xlu0 %v936, 124
      %v1046 = vpop.permute.xlu0 %1045
      %1047 = vrot.lane.b32.xlu0 %v937, 124
      %v1048 = vpop.permute.xlu0 %1047
      %1049 = vrot.lane.b32.xlu0 %v938, 124
      %v1050 = vpop.permute.xlu0 %1049
      %1051 = vrot.lane.b32.xlu0 %v939, 124
      %v1052 = vpop.permute.xlu0 %1051
      %1053 = vrot.lane.b32.xlu0 %v940, 124
      %v1054 = vpop.permute.xlu0 %1053
      %1055 = vrot.lane.b32.xlu0 %v941, 124
      %v1056 = vpop.permute.xlu0 %1055
      %1057 = vrot.lane.b32.xlu0 %v942, 124
      %v1058 = vpop.permute.xlu0 %1057
      %1059 = vrot.lane.b32.xlu0 %v943, 124
      %v1060 = vpop.permute.xlu0 %1059
      %1061 = vrot.lane.b32.xlu0 %v944, 124
      %v1062 = vpop.permute.xlu0 %1061
      %1063 = vrot.lane.b32.xlu0 %v945, 124
      %v1064 = vpop.permute.xlu0 %1063
      %1065 = vrot.lane.b32.xlu0 %v946, 124
      %v1066 = vpop.permute.xlu0 %1065
      %1067 = vrot.lane.b32.xlu0 %v947, 124
      %v1068 = vpop.permute.xlu0 %1067
      %1069 = vrot.lane.b32.xlu0 %v948, 124
      %v1070 = vpop.permute.xlu0 %1069
      %1071 = vrot.lane.b32.xlu0 %v949, 124
      %v1072 = vpop.permute.xlu0 %1071
      %1073 = vrot.lane.b32.xlu0 %v950, 124
      %v1074 = vpop.permute.xlu0 %1073
      %1075 = vrot.lane.b32.xlu0 %v951, 124
      %v1076 = vpop.permute.xlu0 %1075
      %1077 = vrot.lane.b32.xlu0 %v952, 124
      %v1078 = vpop.permute.xlu0 %1077
      %1079 = vrot.lane.b32.xlu0 %v953, 124
      %v1080 = vpop.permute.xlu0 %1079
      %1081 = vrot.lane.b32.xlu0 %v954, 124
      %v1082 = vpop.permute.xlu0 %1081
      %1083 = vrot.lane.b32.xlu0 %v955, 124
      %v1084 = vpop.permute.xlu0 %1083
      %1117 = vst.msk [vmem:[%s298] sm:$0xf] %vm988, %v1022
      %1118 = vst.msk [vmem:[%s298 + $0x4] sm:$0xf] %vm988, %v1024
      %1119 = vst.msk [vmem:[%s298 + $0x8] sm:$0xf] %vm988, %v1026
      %1120 = vst.msk [vmem:[%s298 + $0xc] sm:$0xf] %vm988, %v1028
      %1121 = vst.msk [vmem:[%s298 + $0x10] sm:$0xf] %vm988, %v1030
      %1122 = vst.msk [vmem:[%s298 + $0x14] sm:$0xf] %vm988, %v1032
      %1123 = vst.msk [vmem:[%s298 + $0x18] sm:$0xf] %vm988, %v1034
      %1124 = vst.msk [vmem:[%s298 + $0x1c] sm:$0xf] %vm988, %v1036
      %1125 = vst.msk [vmem:[%s298 + $0x20] sm:$0xf] %vm988, %v1038
      %1126 = vst.msk [vmem:[%s298 + $0x24] sm:$0xf] %vm988, %v1040
      %1127 = vst.msk [vmem:[%s298 + $0x28] sm:$0xf] %vm988, %v1042
      %1128 = vst.msk [vmem:[%s298 + $0x2c] sm:$0xf] %vm988, %v1044
      %1129 = vst.msk [vmem:[%s298 + $0x30] sm:$0xf] %vm988, %v1046
      %1130 = vst.msk [vmem:[%s298 + $0x34] sm:$0xf] %vm988, %v1048
      %1131 = vst.msk [vmem:[%s298 + $0x38] sm:$0xf] %vm988, %v1050
      %1132 = vst.msk [vmem:[%s298 + $0x3c] sm:$0xf] %vm988, %v1052
      %1133 = vst.msk [vmem:[%s298 + $0x40] sm:$0xf] %vm988, %v1054
      %1134 = vst.msk [vmem:[%s298 + $0x44] sm:$0xf] %vm988, %v1056
      %1135 = vst.msk [vmem:[%s298 + $0x48] sm:$0xf] %vm988, %v1058
      %1136 = vst.msk [vmem:[%s298 + $0x4c] sm:$0xf] %vm988, %v1060
      %1137 = vst.msk [vmem:[%s298 + $0x50] sm:$0xf] %vm988, %v1062
      %1138 = vst.msk [vmem:[%s298 + $0x54] sm:$0xf] %vm988, %v1064
      %1139 = vst.msk [vmem:[%s298 + $0x58] sm:$0xf] %vm988, %v1066
      %1140 = vst.msk [vmem:[%s298 + $0x5c] sm:$0xf] %vm988, %v1068
      %1141 = vst.msk [vmem:[%s298 + $0x60] sm:$0xf] %vm988, %v1070
      %1142 = vst.msk [vmem:[%s298 + $0x64] sm:$0xf] %vm988, %v1072
      %1143 = vst.msk [vmem:[%s298 + $0x68] sm:$0xf] %vm988, %v1074
      %1144 = vst.msk [vmem:[%s298 + $0x6c] sm:$0xf] %vm988, %v1076
      %1145 = vst.msk [vmem:[%s298 + $0x70] sm:$0xf] %vm988, %v1078
      %1146 = vst.msk [vmem:[%s298 + $0x74] sm:$0xf] %vm988, %v1080
      %1147 = vst.msk [vmem:[%s298 + $0x78] sm:$0xf] %vm988, %v1082
      %1148 = vst.msk [vmem:[%s298 + $0x7c] sm:$0xf] %vm988, %v1084
      %1149 = vrot.lane.b32.xlu0 %v924, 120
      %v1150 = vpop.permute.xlu0 %1149
      %1151 = vrot.lane.b32.xlu0 %v925, 120
      %v1152 = vpop.permute.xlu0 %1151
      %1153 = vrot.lane.b32.xlu0 %v926, 120
      %v1154 = vpop.permute.xlu0 %1153
      %1155 = vrot.lane.b32.xlu0 %v927, 120
      %v1156 = vpop.permute.xlu0 %1155
      %1157 = vrot.lane.b32.xlu0 %v928, 120
      %v1158 = vpop.permute.xlu0 %1157
      %1159 = vrot.lane.b32.xlu0 %v929, 120
      %v1160 = vpop.permute.xlu0 %1159
      %1161 = vrot.lane.b32.xlu0 %v930, 120
      %v1162 = vpop.permute.xlu0 %1161
      %1163 = vrot.lane.b32.xlu0 %v931, 120
      %v1164 = vpop.permute.xlu0 %1163
      %1165 = vrot.lane.b32.xlu0 %v932, 120
      %v1166 = vpop.permute.xlu0 %1165
      %1167 = vrot.lane.b32.xlu0 %v933, 120
      %v1168 = vpop.permute.xlu0 %1167
      %1169 = vrot.lane.b32.xlu0 %v934, 120
      %v1170 = vpop.permute.xlu0 %1169
      %1171 = vrot.lane.b32.xlu0 %v935, 120
      %v1172 = vpop.permute.xlu0 %1171
      %1173 = vrot.lane.b32.xlu0 %v936, 120
      %v1174 = vpop.permute.xlu0 %1173
      %1175 = vrot.lane.b32.xlu0 %v937, 120
      %v1176 = vpop.permute.xlu0 %1175
      %1177 = vrot.lane.b32.xlu0 %v938, 120
      %v1178 = vpop.permute.xlu0 %1177
      %1179 = vrot.lane.b32.xlu0 %v939, 120
      %v1180 = vpop.permute.xlu0 %1179
      %1181 = vrot.lane.b32.xlu0 %v940, 120
      %v1182 = vpop.permute.xlu0 %1181
      %1183 = vrot.lane.b32.xlu0 %v941, 120
      %v1184 = vpop.permute.xlu0 %1183
      %1185 = vrot.lane.b32.xlu0 %v942, 120
      %v1186 = vpop.permute.xlu0 %1185
      %1187 = vrot.lane.b32.xlu0 %v943, 120
      %v1188 = vpop.permute.xlu0 %1187
      %1189 = vrot.lane.b32.xlu0 %v944, 120
      %v1190 = vpop.permute.xlu0 %1189
      %1191 = vrot.lane.b32.xlu0 %v945, 120
      %v1192 = vpop.permute.xlu0 %1191
      %1193 = vrot.lane.b32.xlu0 %v946, 120
      %v1194 = vpop.permute.xlu0 %1193
      %1195 = vrot.lane.b32.xlu0 %v947, 120
      %v1196 = vpop.permute.xlu0 %1195
      %1197 = vrot.lane.b32.xlu0 %v948, 120
      %v1198 = vpop.permute.xlu0 %1197
      %1199 = vrot.lane.b32.xlu0 %v949, 120
      %v1200 = vpop.permute.xlu0 %1199
      %1201 = vrot.lane.b32.xlu0 %v950, 120
      %v1202 = vpop.permute.xlu0 %1201
      %1203 = vrot.lane.b32.xlu0 %v951, 120
      %v1204 = vpop.permute.xlu0 %1203
      %1205 = vrot.lane.b32.xlu0 %v952, 120
      %v1206 = vpop.permute.xlu0 %1205
      %1207 = vrot.lane.b32.xlu0 %v953, 120
      %v1208 = vpop.permute.xlu0 %1207
      %1209 = vrot.lane.b32.xlu0 %v954, 120
      %v1210 = vpop.permute.xlu0 %1209
      %1211 = vrot.lane.b32.xlu0 %v955, 120
      %v1212 = vpop.permute.xlu0 %1211
      %1245 = vst.msk [vmem:[%s303] sm:$0xf] %vm988, %v1150
      %1246 = vst.msk [vmem:[%s303 + $0x4] sm:$0xf] %vm988, %v1152
      %1247 = vst.msk [vmem:[%s303 + $0x8] sm:$0xf] %vm988, %v1154
      %1248 = vst.msk [vmem:[%s303 + $0xc] sm:$0xf] %vm988, %v1156
      %1249 = vst.msk [vmem:[%s303 + $0x10] sm:$0xf] %vm988, %v1158
      %1250 = vst.msk [vmem:[%s303 + $0x14] sm:$0xf] %vm988, %v1160
      %1251 = vst.msk [vmem:[%s303 + $0x18] sm:$0xf] %vm988, %v1162
      %1252 = vst.msk [vmem:[%s303 + $0x1c] sm:$0xf] %vm988, %v1164
      %1253 = vst.msk [vmem:[%s303 + $0x20] sm:$0xf] %vm988, %v1166
      %1254 = vst.msk [vmem:[%s303 + $0x24] sm:$0xf] %vm988, %v1168
      %1255 = vst.msk [vmem:[%s303 + $0x28] sm:$0xf] %vm988, %v1170
      %1256 = vst.msk [vmem:[%s303 + $0x2c] sm:$0xf] %vm988, %v1172
      %1257 = vst.msk [vmem:[%s303 + $0x30] sm:$0xf] %vm988, %v1174
      %1258 = vst.msk [vmem:[%s303 + $0x34] sm:$0xf] %vm988, %v1176
      %1259 = vst.msk [vmem:[%s303 + $0x38] sm:$0xf] %vm988, %v1178
      %1260 = vst.msk [vmem:[%s303 + $0x3c] sm:$0xf] %vm988, %v1180
      %1261 = vst.msk [vmem:[%s303 + $0x40] sm:$0xf] %vm988, %v1182
      %1262 = vst.msk [vmem:[%s303 + $0x44] sm:$0xf] %vm988, %v1184
      %1263 = vst.msk [vmem:[%s303 + $0x48] sm:$0xf] %vm988, %v1186
      %1264 = vst.msk [vmem:[%s303 + $0x4c] sm:$0xf] %vm988, %v1188
      %1265 = vst.msk [vmem:[%s303 + $0x50] sm:$0xf] %vm988, %v1190
      %1266 = vst.msk [vmem:[%s303 + $0x54] sm:$0xf] %vm988, %v1192
      %1267 = vst.msk [vmem:[%s303 + $0x58] sm:$0xf] %vm988, %v1194
      %1268 = vst.msk [vmem:[%s303 + $0x5c] sm:$0xf] %vm988, %v1196
      %1269 = vst.msk [vmem:[%s303 + $0x60] sm:$0xf] %vm988, %v1198
      %1270 = vst.msk [vmem:[%s303 + $0x64] sm:$0xf] %vm988, %v1200
      %1271 = vst.msk [vmem:[%s303 + $0x68] sm:$0xf] %vm988, %v1202
      %1272 = vst.msk [vmem:[%s303 + $0x6c] sm:$0xf] %vm988, %v1204
      %1273 = vst.msk [vmem:[%s303 + $0x70] sm:$0xf] %vm988, %v1206
      %1274 = vst.msk [vmem:[%s303 + $0x74] sm:$0xf] %vm988, %v1208
      %1275 = vst.msk [vmem:[%s303 + $0x78] sm:$0xf] %vm988, %v1210
      %1276 = vst.msk [vmem:[%s303 + $0x7c] sm:$0xf] %vm988, %v1212
      %p1277 = scmp.lt.s32.totalorder %s19, 1
      %s1278 = scalar_select %p1277, %s19, 1
      %s1279 = smul.addr %s1278, 32
      %s1280 = smul.addr %s1279, 4
      %s1281 = scalar_lea.vmem %s5, %s1280
      %p1282 = scmp.lt.s32.totalorder %s19, 1
      %s1283 = scalar_select %p1282, %s19, 1
      %s1284 = smul.addr %s1283, 32
      %s1285 = smul.addr %s1284, 4
      %s1286 = scalar_lea.vmem %s6, %s1285
      %p1287 = scmp.lt.s32.totalorder %s19, 1
      %s1288 = scalar_select %p1287, %s19, 1
      %s1289 = smul.addr %s1288, 32
      %s1290 = smul.addr %s1289, 4
      %s1291 = scalar_lea.vmem %s7, %s1290
      // Predicated region
      $region41: #{tpu_custom_call.1} parent=39 // pred_check
        %p1292 = pneg %p147
      $region42: #{tpu_custom_call.1} parent=39 // pred_check_branch
        %1294 = sbr.rel (%p1292) target = $region44
      $region43: #{tpu_custom_call.1} parent=39 // pred_region
        _
      $region44: #{tpu_custom_call.1} parent=39 // pred_fallthru
        _
      // Predicated region
      $region45: #{tpu_custom_call.1} parent=39 // pred_check
        %p1295 = pneg %p173
      $region46: #{tpu_custom_call.1} parent=39 // pred_check_branch
        %1297 = sbr.rel (%p1295) target = $region48
      $region47: #{tpu_custom_call.1} parent=39 // pred_region
        _
      $region48: #{tpu_custom_call.1} parent=39 // pred_fallthru
        _
      // Predicated region
      $region49: #{tpu_custom_call.1} parent=39 // pred_check
        %p1298 = pneg %p199
      $region50: #{tpu_custom_call.1} parent=39 // pred_check_branch
        %1300 = sbr.rel (%p1298) target = $region52
      $region51: #{tpu_custom_call.1} parent=39 // pred_region
        _
      $region52: #{tpu_custom_call.1} parent=39 // pred_fallthru
        _
    $region40: #{tpu_custom_call.1} parent=5 // pred_fallthru
      _
    %p1301 = scmp.le.s32.totalorder 2, %s14
    // Predicated region
    $region53: #{tpu_custom_call.1} parent=5 // pred_check
      %p1302 = pneg %p1301
    $region54: #{tpu_custom_call.1} parent=5 // pred_check_branch
      %1304 = sbr.rel (%p1302) target = $region56
    $region55: #{tpu_custom_call.1} parent=5 // pred_region
      %s1305 = ssub.s32 %s14, 2
      // Predicated region
      $region57: #{tpu_custom_call.1} parent=55 // pred_check
        %p1306 = pneg %p153
      $region58: #{tpu_custom_call.1} parent=55 // pred_check_branch
        %1308 = sbr.rel (%p1306) target = $region60
      $region59: #{tpu_custom_call.1} parent=55 // pred_region
        %p1309 = scmp.lt.s32.totalorder %s20, 1
        %s1310 = scalar_select %p1309, %s20, 1
        %s1311 = smul.addr %s1310, 32
        %s1312 = smul.addr %s1311, 4
        %s1313 = scalar_lea.vmem %s5, %s1312
      $region60: #{tpu_custom_call.1} parent=55 // pred_fallthru
        _
      // Predicated region
      $region61: #{tpu_custom_call.1} parent=55 // pred_check
        %p1314 = pneg %p179
      $region62: #{tpu_custom_call.1} parent=55 // pred_check_branch
        %1316 = sbr.rel (%p1314) target = $region64
      $region63: #{tpu_custom_call.1} parent=55 // pred_region
        %p1317 = scmp.lt.s32.totalorder %s20, 1
        %s1318 = scalar_select %p1317, %s20, 1
        %s1319 = smul.addr %s1318, 32
        %s1320 = smul.addr %s1319, 4
        %s1321 = scalar_lea.vmem %s6, %s1320
      $region64: #{tpu_custom_call.1} parent=55 // pred_fallthru
        _
      // Predicated region
      $region65: #{tpu_custom_call.1} parent=55 // pred_check
        %p1322 = pneg %p205
      $region66: #{tpu_custom_call.1} parent=55 // pred_check_branch
        %1324 = sbr.rel (%p1322) target = $region68
      $region67: #{tpu_custom_call.1} parent=55 // pred_region
        %p1325 = scmp.lt.s32.totalorder %s20, 1
        %s1326 = scalar_select %p1325, %s20, 1
        %s1327 = smul.addr %s1326, 32
        %s1328 = smul.addr %s1327, 4
        %s1329 = scalar_lea.vmem %s7, %s1328
      $region68: #{tpu_custom_call.1} parent=55 // pred_fallthru
        _
    $region56: #{tpu_custom_call.1} parent=5 // pred_fallthru
      _
  $region6: #{tpu_custom_call.1} parent=0 // loop_footer
    %s18 = sadd.s32 1, %s14
  $region7: #{tpu_custom_call.1} parent=0 // loop_footer_branch
    %13 = sbr.rel target = $region3
  $region8: #{tpu_custom_call.1} parent=0 // loop_exit
    _

</llo_original>
